<compile_context>
chip_gen: v7x
topology: tpu7x:2x2x1
jax: 0.10.0
libtpu: 0.0.40
codegen_flags: <defaults>
</compile_context>

<pallas_src>
import functools
import math

import numpy as np
import jax
import jax.numpy as jnp
from jax import lax
from jax.experimental import pallas as pl
from jax.experimental.pallas import tpu as pltpu

LANE = 128


# ----------------------------------------------------------------------------
# Small helpers
# ----------------------------------------------------------------------------
def _round_up(x, m):
    return ((x + m - 1) // m) * m


def _pad2(a, rows, cols):
    return jnp.pad(a, ((0, rows - a.shape[0]), (0, cols - a.shape[1])))


def _nbytes(shape, dtype):
    return math.prod(shape) * np.dtype(dtype).itemsize


def _vmem_cap_bytes():
    try:
        return int(pltpu.get_tpu_info().vmem_capacity_bytes)
    except Exception:
        return 64 << 20  # conservative: v7x per-TensorCore VMEM


def _compiler_params(num_parallel_axes, block_bytes):
    # Double-buffered pipeline blocks + margin, clamped under the chip's VMEM
    # (v5e/v6e default scoped limit is only 16/32 MiB; v7x has 64 MiB total).
    need = 2 * sum(block_bytes) + (2 << 20)
    limit = int(min(max(need, 32 << 20), _vmem_cap_bytes() - (8 << 20)))
    sem = ("parallel",) * num_parallel_axes if num_parallel_axes else None
    return pltpu.CompilerParams(dimension_semantics=sem, vmem_limit_bytes=limit)


# ----------------------------------------------------------------------------
# Kernels
# ----------------------------------------------------------------------------
def _theta1_kernel(x_ref, w1_ref, b1_ref, th_ref):
    # theta1 = X @ W1 + b1   (row tile)
    acc = jnp.dot(x_ref[...], w1_ref[...], preferred_element_type=jnp.float32)
    th_ref[...] = (acc + b1_ref[...]).astype(th_ref.dtype)


def _smooth1_kernel(l_ref, th_ref, w23_ref, b23_ref, t2_ref):
    # t2 = relu(L @ theta1) @ [W2||W3] + [b2||b3]   (row tile of L, full theta1)
    h1 = jnp.maximum(
        jnp.dot(l_ref[...], th_ref[...], preferred_element_type=jnp.float32), 0.0)
    acc = jnp.dot(h1.astype(w23_ref.dtype), w23_ref[...],
                  preferred_element_type=jnp.float32)
    t2_ref[...] = (acc + b23_ref[...]).astype(t2_ref.dtype)


def _smooth2_kernel(l_ref, t2_ref, ml_ref):
    # mu || logvar = L @ t2   (row tile of L, full t2) -- no bias reassociation.
    ml_ref[...] = jnp.dot(l_ref[...], t2_ref[...],
                          preferred_element_type=jnp.float32)


def _attention_kernel(m_real, he_ref, mu_ref, wa1_ref, ba1_ref, wa2_ref,
                      z_ref, ew_ref):
    # Z = He_norm @ mu ; additive attention + softmax over (real) hyperedges.
    z = jnp.dot(he_ref[...], mu_ref[...], preferred_element_type=jnp.float32)
    z_ref[...] = z
    h = jnp.tanh(jnp.dot(z, wa1_ref[...], preferred_element_type=jnp.float32)
                 + ba1_ref[...])
    score = jnp.dot(h, wa2_ref[...], preferred_element_type=jnp.float32)  # (Mp, 1)
    rows = lax.broadcasted_iota(jnp.int32, score.shape, 0)
    score = jnp.where(rows < m_real, score, -1e30)   # mask padded hyperedges
    score = score - jnp.max(score, axis=0, keepdims=True)
    e = jnp.exp(score)
    # edge_w is only num_hyperedges scalars; its (Mp, 1) layout is immaterial next
    # to the lane-dense Z / H / mu||logvar outputs.
    ew_ref[...] = e / jnp.sum(e, axis=0, keepdims=True)


def _decoder_kernel(mu_ref, z_ref, h_ref):
    # H = sigmoid(mu @ Z^T): contract feature dims directly (no explicit transpose).
    logits = lax.dot_general(mu_ref[...], z_ref[...], (((1,), (1,)), ((), ())),
                             preferred_element_type=jnp.float32)
    h_ref[...] = jax.nn.sigmoid(logits)


# ----------------------------------------------------------------------------
# Wrapper (mirrors HGVAE.forward in eval mode)
# ----------------------------------------------------------------------------
def hgvae_forward(X, L, He_norm, params, *, mxu_dtype=jnp.float32, tile_n=256):
    """Returns (X_rep, Z, H, mu, logvar, edge_w) as in HGVAE.forward (eval)."""
    f32 = jnp.float32
    N, in_c = X.shape
    M = He_norm.shape[0]
    hid = params["W1"].shape[1]
    n_cls = params["W2"].shape[1]
    att_hid = params["Wa1"].shape[1]

    # Lane-dense padded sizes.
    in_p = _round_up(in_c, LANE)
    hid_p = _round_up(hid, LANE)
    cls_p = _round_up(n_cls, LANE)
    att_p = _round_up(att_hid, LANE)
    m_p = _round_up(M, LANE)

    tn = min(_round_up(tile_n, 8), _round_up(N, 8))  # row tile (sublane multiple)
    n_p = _round_up(N, tn)
    nt = n_p // tn
    msize = np.dtype(mxu_dtype).itemsize

    # ---- operand prep: zero-pad + cast the MXU operands -----------------------
    Xp = _pad2(X, n_p, in_p).astype(mxu_dtype)
    Lp = _pad2(L, n_p, n_p).astype(mxu_dtype)
    Hep = _pad2(He_norm, m_p, n_p).astype(mxu_dtype)
    W1 = _pad2(params["W1"], in_p, hid_p).astype(mxu_dtype)
    b1 = _pad2(params["b1"], 1, hid_p).astype(f32)
    # Fused, lane-dense layer2/layer3 weights: cols [0:cls_p) -> mu, [cls_p:) -> logvar.
    W23 = _pad2(jnp.concatenate([_pad2(params["W2"], hid, cls_p),
                                 _pad2(params["W3"], hid, cls_p)], axis=1),
                hid_p, 2 * cls_p).astype(mxu_dtype)
    b23 = jnp.concatenate([_pad2(params["b2"], 1, cls_p),
                           _pad2(params["b3"], 1, cls_p)], axis=1).astype(f32)
    # Attention weights stay f32 (tiny; v5e has no bf16 VPU/EUP anyway).
    Wa1 = _pad2(params["Wa1"], cls_p, att_p).astype(f32)
    ba1 = _pad2(params["ba1"], 1, att_p).astype(f32)
    Wa2 = _pad2(params["Wa2"], att_p, 1).astype(f32)

    vmem = pl.BlockSpec(memory_space=pltpu.MemorySpace.VMEM)

    # ---- 1) theta1 = X @ W1 + b1   (row-tiled, parallel) ----------------------
    theta1 = pl.pallas_call(
        _theta1_kernel,
        out_shape=jax.ShapeDtypeStruct((n_p, hid_p), mxu_dtype),
        grid=(nt,),
        in_specs=[pl.BlockSpec((tn, in_p), lambda i: (i, 0)),
                  pl.BlockSpec((in_p, hid_p), lambda i: (0, 0)),
                  pl.BlockSpec((1, hid_p), lambda i: (0, 0))],
        out_specs=pl.BlockSpec((tn, hid_p), lambda i: (i, 0)),
        compiler_params=_compiler_params(
            1, [_nbytes((tn, in_p), mxu_dtype), _nbytes((in_p, hid_p), mxu_dtype),
                _nbytes((1, hid_p), f32), _nbytes((tn, hid_p), mxu_dtype)]),
        cost_estimate=pl.CostEstimate(
            flops=2 * n_p * in_p * hid_p, transcendentals=0,
            bytes_accessed=int(Xp.size + W1.size + n_p * hid_p) * msize),
    )(Xp, W1, b1)

    # ---- 2) t2 = relu(L @ theta1) @ W23 + b23   (row-tiled, parallel) ---------
    t2 = pl.pallas_call(
        _smooth1_kernel,
        out_shape=jax.ShapeDtypeStruct((n_p, 2 * cls_p), mxu_dtype),
        grid=(nt,),
        in_specs=[pl.BlockSpec((tn, n_p), lambda i: (i, 0)),
                  pl.BlockSpec((n_p, hid_p), lambda i: (0, 0)),
                  pl.BlockSpec((hid_p, 2 * cls_p), lambda i: (0, 0)),
                  pl.BlockSpec((1, 2 * cls_p), lambda i: (0, 0))],
        out_specs=pl.BlockSpec((tn, 2 * cls_p), lambda i: (i, 0)),
        compiler_params=_compiler_params(
            1, [_nbytes((tn, n_p), mxu_dtype), _nbytes((n_p, hid_p), mxu_dtype),
                _nbytes((hid_p, 2 * cls_p), mxu_dtype),
                _nbytes((1, 2 * cls_p), f32), _nbytes((tn, 2 * cls_p), mxu_dtype)]),
        cost_estimate=pl.CostEstimate(
            flops=2 * n_p * n_p * hid_p + 4 * n_p * hid_p * cls_p,
            transcendentals=0,
            bytes_accessed=int(Lp.size + theta1.size + W23.size
                               + n_p * 2 * cls_p) * msize),
    )(Lp, theta1, W23, b23)

    # ---- 3) mu || logvar = L @ t2   (row-tiled, parallel) ---------------------
    ml = pl.pallas_call(
        _smooth2_kernel,
        out_shape=jax.ShapeDtypeStruct((n_p, 2 * cls_p), f32),
        grid=(nt,),
        in_specs=[pl.BlockSpec((tn, n_p), lambda i: (i, 0)),
                  pl.BlockSpec((n_p, 2 * cls_p), lambda i: (0, 0))],
        out_specs=pl.BlockSpec((tn, 2 * cls_p), lambda i: (i, 0)),
        compiler_params=_compiler_params(
            1, [_nbytes((tn, n_p), mxu_dtype), _nbytes((n_p, 2 * cls_p), mxu_dtype),
                _nbytes((tn, 2 * cls_p), f32)]),
        cost_estimate=pl.CostEstimate(
            flops=4 * n_p * n_p * cls_p, transcendentals=0,
            bytes_accessed=int(Lp.size + t2.size) * msize + 4 * n_p * 2 * cls_p),
    )(Lp, t2)

    mu_pad = ml[:, :cls_p]              # (n_p, cls_p) f32, padded cols are zero
    mu_mxu = mu_pad.astype(mxu_dtype)   # eval-mode reparameterize -> mu

    # ---- 4) attention over hyperedges (small; single block) -------------------
    Z_pad, ew_pad = pl.pallas_call(
        functools.partial(_attention_kernel, M),
        out_shape=(jax.ShapeDtypeStruct((m_p, cls_p), f32),
                   jax.ShapeDtypeStruct((m_p, 1), f32)),
        in_specs=[vmem] * 5,
        out_specs=(vmem, vmem),
        compiler_params=_compiler_params(
            0, [_nbytes((m_p, n_p), mxu_dtype), _nbytes((n_p, cls_p), mxu_dtype),
                _nbytes((cls_p, att_p), f32), _nbytes((m_p, cls_p), f32),
                _nbytes((m_p, 1), f32)]),
        cost_estimate=pl.CostEstimate(
            flops=2 * m_p * n_p * cls_p + 2 * m_p * cls_p * att_p + 2 * m_p * att_p,
            transcendentals=m_p * att_p + 2 * m_p,
            bytes_accessed=int(Hep.size + mu_mxu.size) * msize
                           + 4 * (m_p * cls_p + m_p)),
    )(Hep, mu_mxu, Wa1, ba1, Wa2)

    # ---- 5) decoder H = sigmoid(mu @ Z^T)   (row-tiled, parallel) -------------
    H_pad = pl.pallas_call(
        _decoder_kernel,
        out_shape=jax.ShapeDtypeStruct((n_p, m_p), f32),
        grid=(nt,),
        in_specs=[pl.BlockSpec((tn, cls_p), lambda i: (i, 0)),
                  pl.BlockSpec((m_p, cls_p), lambda i: (0, 0))],
        out_specs=pl.BlockSpec((tn, m_p), lambda i: (i, 0)),
        compiler_params=_compiler_params(
            1, [_nbytes((tn, cls_p), mxu_dtype), _nbytes((m_p, cls_p), mxu_dtype),
                _nbytes((tn, m_p), f32)]),
        cost_estimate=pl.CostEstimate(
            flops=2 * n_p * cls_p * m_p, transcendentals=n_p * m_p,
            bytes_accessed=(n_p * cls_p + m_p * cls_p) * msize + 4 * n_p * m_p),
    )(mu_mxu, Z_pad.astype(mxu_dtype))

    # ---- unpad / split outputs -------------------------------------------------
    mu = ml[:N, :n_cls]
    logvar = ml[:N, cls_p:cls_p + n_cls]
    Z = Z_pad[:M, :n_cls]
    H = H_pad[:N, :M]
    edge_w = ew_pad[:M, :]
    return mu, Z, H, mu, logvar, edge_w   # X_rep == mu in eval mode


# ----------------------------------------------------------------------------
# Pure-JAX reference (un-fused, un-padded) for a tolerance check.
# ----------------------------------------------------------------------------
def hgvae_forward_ref(X, L, He_norm, params):
    theta1 = X @ params["W1"] + params["b1"]
    hidden1 = jnp.maximum(L @ theta1, 0.0)
    mu = L @ (hidden1 @ params["W2"] + params["b2"])
    logvar = L @ (hidden1 @ params["W3"] + params["b3"])
    x_rep = mu
    z = He_norm @ x_rep
    h = jnp.tanh(z @ params["Wa1"] + params["ba1"])
    s = h @ params["Wa2"]
    s = s - jnp.max(s, axis=0, keepdims=True)
    e = jnp.exp(s)
    ew = e / jnp.sum(e, axis=0, keepdims=True)
    Hdec = jax.nn.sigmoid(x_rep @ z.T)
    return x_rep, z, Hdec, mu, logvar, ew


# ----------------------------------------------------------------------------
# Deterministic setup + run
# ----------------------------------------------------------------------------
if __name__ == "__main__":
    key = jax.random.PRNGKey(0)
    ks = jax.random.split(key, 12)

    # Small shapes consistent with the module.
    N, M = 16, 8                 # vertices, num_hyperedges
    in_c, hid_c, n_cls, att_hid = 32, 32, 16, 50

    X = jax.random.normal(ks[0], (N, in_c), dtype=jnp.float32)

    # Hypergraph incidence matrix (N, M); guarantee nonzero degrees.
    H_inc = (jax.random.uniform(ks[1], (N, M)) < 0.4).astype(jnp.float32)
    H_inc = H_inc.at[:, 0].set(1.0).at[0, :].set(1.0)

    # Precompute HGNN operators (unit hyperedge weights).
    d_v = jnp.sum(H_inc, axis=1)
    d_e = jnp.sum(H_inc, axis=0)
    Dv_inv_sqrt = jnp.diag(1.0 / jnp.sqrt(d_v))
    De_inv = jnp.diag(1.0 / d_e)
    L = Dv_inv_sqrt @ H_inc @ De_inv @ H_inc.T @ Dv_inv_sqrt   # (N, N)
    He_norm = De_inv @ H_inc.T                                  # (M, N)

    scale = 0.1
    params = {
        "W1": scale * jax.random.normal(ks[2], (in_c, hid_c), jnp.float32),
        "b1": scale * jax.random.normal(ks[3], (1, hid_c), jnp.float32),
        "W2": scale * jax.random.normal(ks[4], (hid_c, n_cls), jnp.float32),
        "b2": scale * jax.random.normal(ks[5], (1, n_cls), jnp.float32),
        "W3": scale * jax.random.normal(ks[6], (hid_c, n_cls), jnp.float32),
        "b3": scale * jax.random.normal(ks[7], (1, n_cls), jnp.float32),
        "Wa1": scale * jax.random.normal(ks[8], (n_cls, att_hid), jnp.float32),
        "ba1": scale * jax.random.normal(ks[9], (1, att_hid), jnp.float32),
        "Wa2": scale * jax.random.normal(ks[10], (att_hid, 1), jnp.float32),
    }

    refs = hgvae_forward_ref(X, L, He_norm, params)

    # f32 MXU path; tile_n=8 -> 2 row tiles at N=16 to exercise the parallel grid.
    fwd_f32 = jax.jit(functools.partial(hgvae_forward,
                                        mxu_dtype=jnp.float32, tile_n=8))
    outs = jax.block_until_ready(fwd_f32(X, L, He_norm, params))

    X_out, Z_out, H_out, mu_out, logvar_out, edge_w_out = outs
    assert X_out.shape == (N, n_cls)
    assert Z_out.shape == (M, n_cls)
    assert H_out.shape == (N, M)
    assert mu_out.shape == (N, n_cls)
    assert logvar_out.shape == (N, n_cls)
    assert edge_w_out.shape == (M, 1)
    assert all(bool(jnp.all(jnp.isfinite(o))) for o in outs)

    for got, want in zip(outs, refs):
        assert got.shape == want.shape
        assert jnp.allclose(got, want, rtol=2e-3, atol=2e-3)

    # bf16 MXU operands (f32 accumulation / f32 elementwise) — looser tolerance.
    fwd_bf16 = jax.jit(functools.partial(hgvae_forward,
                                         mxu_dtype=jnp.bfloat16, tile_n=8))
    outs_bf16 = jax.block_until_ready(fwd_bf16(X, L, He_norm, params))
    for got, want in zip(outs_bf16, refs):
        assert got.shape == want.shape
        assert jnp.allclose(got, want, rtol=5e-2, atol=5e-2)

    print("KERNEL_OK")
</pallas_src>

<mosaic_0001>
module attributes {stable_mosaic.version = 11 : i64} {
  func.func @_smooth1_kernel(%arg0: i32, %arg1: memref<8x16xf32, #tpu.memory_space<vmem>>, %arg2: memref<16x128xf32, #tpu.memory_space<vmem>>, %arg3: memref<128x256xf32, #tpu.memory_space<vmem>>, %arg4: memref<1x256xf32, #tpu.memory_space<vmem>>, %arg5: memref<8x256xf32, #tpu.memory_space<vmem>>) attributes {dimension_semantics = [#tpu.dimension_semantics<parallel>], iteration_bounds = array<i64: 2>, scalar_prefetch = 0 : i64, scratch_operands = 0 : i64, tpu.core_type = #tpu.core_type<tc>, window_params = [{transform_indices = @transform_0, window_bounds = array<i64: 8, 16>}, {pipeline_mode = #tpu.pipeline_mode<synchronous>, transform_indices = @transform_1, window_bounds = array<i64: 16, 128>}, {pipeline_mode = #tpu.pipeline_mode<synchronous>, transform_indices = @transform_2, window_bounds = array<i64: 128, 256>}, {pipeline_mode = #tpu.pipeline_mode<synchronous>, transform_indices = @transform_3, window_bounds = array<i64: 1, 256>}, {transform_indices = @transform_4, window_bounds = array<i64: 8, 256>}]} {
    %c0 = arith.constant 0 : index
    %c0_0 = arith.constant 0 : index
    %0 = vector.load %arg1[%c0, %c0_0] : memref<8x16xf32, #tpu.memory_space<vmem>>, vector<8x16xf32>
    %c0_1 = arith.constant 0 : index
    %c0_2 = arith.constant 0 : index
    %1 = vector.load %arg2[%c0_1, %c0_2] : memref<16x128xf32, #tpu.memory_space<vmem>>, vector<16x128xf32>
    %cst = arith.constant dense<0.000000e+00> : vector<8x128xf32>
    %2 = tpu.matmul %0, %1, %cst {dimension_numbers = #tpu.dot_dimension_numbers<[1], [0], [0], [1], [0, 0, 1, 1], [], []>} : vector<8x16xf32>, vector<16x128xf32>, vector<8x128xf32> -> vector<8x128xf32>
    %cst_3 = arith.constant 0.000000e+00 : f32
    %3 = vector.broadcast %cst_3 : f32 to vector<8x128xf32>
    %4 = arith.maximumf %2, %3 : vector<8x128xf32>
    %c0_4 = arith.constant 0 : index
    %c0_5 = arith.constant 0 : index
    %5 = vector.load %arg3[%c0_4, %c0_5] : memref<128x256xf32, #tpu.memory_space<vmem>>, vector<128x256xf32>
    %cst_6 = arith.constant dense<0.000000e+00> : vector<8x256xf32>
    %6 = tpu.matmul %4, %5, %cst_6 {dimension_numbers = #tpu.dot_dimension_numbers<[1], [0], [0], [1], [0, 0, 1, 1], [], []>} : vector<8x128xf32>, vector<128x256xf32>, vector<8x256xf32> -> vector<8x256xf32>
    %c0_7 = arith.constant 0 : index
    %c0_8 = arith.constant 0 : index
    %7 = vector.load %arg4[%c0_7, %c0_8] : memref<1x256xf32, #tpu.memory_space<vmem>>, vector<1x256xf32>
    %8 = vector.broadcast %7 : vector<1x256xf32> to vector<8x256xf32>
    %9 = arith.addf %6, %8 : vector<8x256xf32>
    %c0_9 = arith.constant 0 : index
    %c0_10 = arith.constant 0 : index
    %10 = vector.load %arg5[%c0_9, %c0_10] : memref<8x256xf32, #tpu.memory_space<vmem>>, vector<8x256xf32>
    tpu.vector_store %arg5[%c0_9, %c0_10], %9 {strides = array<i32>} : memref<8x256xf32, #tpu.memory_space<vmem>>, vector<8x256xf32>,
    return
  }
  func.func @transform_0(%arg0: i32) -> (i32, i32) {
    %c0_i32 = arith.constant 0 : i32
    %c0_i32_0 = arith.constant 0 : i32
    return %arg0, %c0_i32 : i32, i32
  }
  func.func @transform_1(%arg0: i32) -> (i32, i32) {
    %c0_i32 = arith.constant 0 : i32
    %c0_i32_0 = arith.constant 0 : i32
    %c0_i32_1 = arith.constant 0 : i32
    return %c0_i32, %c0_i32_0 : i32, i32
  }
  func.func @transform_2(%arg0: i32) -> (i32, i32) {
    %c0_i32 = arith.constant 0 : i32
    %c0_i32_0 = arith.constant 0 : i32
    %c0_i32_1 = arith.constant 0 : i32
    return %c0_i32, %c0_i32_0 : i32, i32
  }
  func.func @transform_3(%arg0: i32) -> (i32, i32) {
    %c0_i32 = arith.constant 0 : i32
    %c0_i32_0 = arith.constant 0 : i32
    %c0_i32_1 = arith.constant 0 : i32
    return %c0_i32, %c0_i32_0 : i32, i32
  }
  func.func @transform_4(%arg0: i32) -> (i32, i32) {
    %c0_i32 = arith.constant 0 : i32
    %c0_i32_0 = arith.constant 0 : i32
    return %arg0, %c0_i32 : i32, i32
  }
}

module attributes {stable_mosaic.version = 11 : i64} {
  func.func @_smooth2_kernel(%arg0: i32, %arg1: memref<8x16xf32, #tpu.memory_space<vmem>>, %arg2: memref<16x256xf32, #tpu.memory_space<vmem>>, %arg3: memref<8x256xf32, #tpu.memory_space<vmem>>) attributes {dimension_semantics = [#tpu.dimension_semantics<parallel>], iteration_bounds = array<i64: 2>, scalar_prefetch = 0 : i64, scratch_operands = 0 : i64, tpu.core_type = #tpu.core_type<tc>, window_params = [{transform_indices = @transform_0, window_bounds = array<i64: 8, 16>}, {pipeline_mode = #tpu.pipeline_mode<synchronous>, transform_indices = @transform_1, window_bounds = array<i64: 16, 256>}, {transform_indices = @transform_2, window_bounds = array<i64: 8, 256>}]} {
    %c0 = arith.constant 0 : index
    %c0_0 = arith.constant 0 : index
    %0 = vector.load %arg1[%c0, %c0_0] : memref<8x16xf32, #tpu.memory_space<vmem>>, vector<8x16xf32>
    %c0_1 = arith.constant 0 : index
    %c0_2 = arith.constant 0 : index
    %1 = vector.load %arg2[%c0_1, %c0_2] : memref<16x256xf32, #tpu.memory_space<vmem>>, vector<16x256xf32>
    %cst = arith.constant dense<0.000000e+00> : vector<8x256xf32>
    %2 = tpu.matmul %0, %1, %cst {dimension_numbers = #tpu.dot_dimension_numbers<[1], [0], [0], [1], [0, 0, 1, 1], [], []>} : vector<8x16xf32>, vector<16x256xf32>, vector<8x256xf32> -> vector<8x256xf32>
    %c0_3 = arith.constant 0 : index
    %c0_4 = arith.constant 0 : index
    %3 = vector.load %arg3[%c0_3, %c0_4] : memref<8x256xf32, #tpu.memory_space<vmem>>, vector<8x256xf32>
    tpu.vector_store %arg3[%c0_3, %c0_4], %2 {strides = array<i32>} : memref<8x256xf32, #tpu.memory_space<vmem>>, vector<8x256xf32>,
    return
  }
  func.func @transform_0(%arg0: i32) -> (i32, i32) {
    %c0_i32 = arith.constant 0 : i32
    %c0_i32_0 = arith.constant 0 : i32
    return %arg0, %c0_i32 : i32, i32
  }
  func.func @transform_1(%arg0: i32) -> (i32, i32) {
    %c0_i32 = arith.constant 0 : i32
    %c0_i32_0 = arith.constant 0 : i32
    %c0_i32_1 = arith.constant 0 : i32
    return %c0_i32, %c0_i32_0 : i32, i32
  }
  func.func @transform_2(%arg0: i32) -> (i32, i32) {
    %c0_i32 = arith.constant 0 : i32
    %c0_i32_0 = arith.constant 0 : i32
    return %arg0, %c0_i32 : i32, i32
  }
}

module attributes {stable_mosaic.version = 11 : i64} {
  func.func @_theta1_kernel(%arg0: i32, %arg1: memref<8x128xf32, #tpu.memory_space<vmem>>, %arg2: memref<128x128xf32, #tpu.memory_space<vmem>>, %arg3: memref<1x128xf32, #tpu.memory_space<vmem>>, %arg4: memref<8x128xf32, #tpu.memory_space<vmem>>) attributes {dimension_semantics = [#tpu.dimension_semantics<parallel>], iteration_bounds = array<i64: 2>, scalar_prefetch = 0 : i64, scratch_operands = 0 : i64, tpu.core_type = #tpu.core_type<tc>, window_params = [{transform_indices = @transform_0, window_bounds = array<i64: 8, 128>}, {pipeline_mode = #tpu.pipeline_mode<synchronous>, transform_indices = @transform_1, window_bounds = array<i64: 128, 128>}, {pipeline_mode = #tpu.pipeline_mode<synchronous>, transform_indices = @transform_2, window_bounds = array<i64: 1, 128>}, {transform_indices = @transform_3, window_bounds = array<i64: 8, 128>}]} {
    %c0 = arith.constant 0 : index
    %c0_0 = arith.constant 0 : index
    %0 = vector.load %arg1[%c0, %c0_0] : memref<8x128xf32, #tpu.memory_space<vmem>>, vector<8x128xf32>
    %c0_1 = arith.constant 0 : index
    %c0_2 = arith.constant 0 : index
    %1 = vector.load %arg2[%c0_1, %c0_2] : memref<128x128xf32, #tpu.memory_space<vmem>>, vector<128x128xf32>
    %cst = arith.constant dense<0.000000e+00> : vector<8x128xf32>
    %2 = tpu.matmul %0, %1, %cst {dimension_numbers = #tpu.dot_dimension_numbers<[1], [0], [0], [1], [0, 0, 1, 1], [], []>} : vector<8x128xf32>, vector<128x128xf32>, vector<8x128xf32> -> vector<8x128xf32>
    %c0_3 = arith.constant 0 : index
    %c0_4 = arith.constant 0 : index
    %3 = vector.load %arg3[%c0_3, %c0_4] : memref<1x128xf32, #tpu.memory_space<vmem>>, vector<1x128xf32>
    %4 = vector.broadcast %3 : vector<1x128xf32> to vector<8x128xf32>
    %5 = arith.addf %2, %4 : vector<8x128xf32>
    %c0_5 = arith.constant 0 : index
    %c0_6 = arith.constant 0 : index
    %6 = vector.load %arg4[%c0_5, %c0_6] : memref<8x128xf32, #tpu.memory_space<vmem>>, vector<8x128xf32>
    tpu.vector_store %arg4[%c0_5, %c0_6], %5 {strides = array<i32>} : memref<8x128xf32, #tpu.memory_space<vmem>>, vector<8x128xf32>,
    return
  }
  func.func @transform_0(%arg0: i32) -> (i32, i32) {
    %c0_i32 = arith.constant 0 : i32
    %c0_i32_0 = arith.constant 0 : i32
    return %arg0, %c0_i32 : i32, i32
  }
  func.func @transform_1(%arg0: i32) -> (i32, i32) {
    %c0_i32 = arith.constant 0 : i32
    %c0_i32_0 = arith.constant 0 : i32
    %c0_i32_1 = arith.constant 0 : i32
    return %c0_i32, %c0_i32_0 : i32, i32
  }
  func.func @transform_2(%arg0: i32) -> (i32, i32) {
    %c0_i32 = arith.constant 0 : i32
    %c0_i32_0 = arith.constant 0 : i32
    %c0_i32_1 = arith.constant 0 : i32
    return %c0_i32, %c0_i32_0 : i32, i32
  }
  func.func @transform_3(%arg0: i32) -> (i32, i32) {
    %c0_i32 = arith.constant 0 : i32
    %c0_i32_0 = arith.constant 0 : i32
    return %arg0, %c0_i32 : i32, i32
  }
}

module attributes {stable_mosaic.version = 11 : i64} {
  func.func @_attention_kernel(%arg0: memref<128x16xf32, #tpu.memory_space<vmem>>, %arg1: memref<16x128xf32, #tpu.memory_space<vmem>>, %arg2: memref<128x128xf32, #tpu.memory_space<vmem>>, %arg3: memref<1x128xf32, #tpu.memory_space<vmem>>, %arg4: memref<128x1xf32, #tpu.memory_space<vmem>>, %arg5: memref<128x128xf32, #tpu.memory_space<vmem>>, %arg6: memref<128x1xf32, #tpu.memory_space<vmem>>) attributes {dimension_semantics = [], scalar_prefetch = 0 : i64, scratch_operands = 0 : i64, tpu.core_type = #tpu.core_type<tc>} {
    %c0 = arith.constant 0 : index
    %c0_0 = arith.constant 0 : index
    %0 = vector.load %arg0[%c0, %c0_0] : memref<128x16xf32, #tpu.memory_space<vmem>>, vector<128x16xf32>
    %c0_1 = arith.constant 0 : index
    %c0_2 = arith.constant 0 : index
    %1 = vector.load %arg1[%c0_1, %c0_2] : memref<16x128xf32, #tpu.memory_space<vmem>>, vector<16x128xf32>
    %cst = arith.constant dense<0.000000e+00> : vector<128x128xf32>
    %2 = tpu.matmul %0, %1, %cst {dimension_numbers = #tpu.dot_dimension_numbers<[1], [0], [0], [1], [0, 0, 1, 1], [], []>} : vector<128x16xf32>, vector<16x128xf32>, vector<128x128xf32> -> vector<128x128xf32>
    %c0_3 = arith.constant 0 : index
    %c0_4 = arith.constant 0 : index
    %3 = vector.load %arg5[%c0_3, %c0_4] : memref<128x128xf32, #tpu.memory_space<vmem>>, vector<128x128xf32>
    tpu.vector_store %arg5[%c0_3, %c0_4], %2 {strides = array<i32>} : memref<128x128xf32, #tpu.memory_space<vmem>>, vector<128x128xf32>,
    %c0_5 = arith.constant 0 : index
    %c0_6 = arith.constant 0 : index
    %4 = vector.load %arg2[%c0_5, %c0_6] : memref<128x128xf32, #tpu.memory_space<vmem>>, vector<128x128xf32>
    %cst_7 = arith.constant dense<0.000000e+00> : vector<128x128xf32>
    %5 = tpu.matmul %2, %4, %cst_7 {dimension_numbers = #tpu.dot_dimension_numbers<[1], [0], [0], [1], [0, 0, 1, 1], [], []>} : vector<128x128xf32>, vector<128x128xf32>, vector<128x128xf32> -> vector<128x128xf32>
    %c0_8 = arith.constant 0 : index
    %c0_9 = arith.constant 0 : index
    %6 = vector.load %arg3[%c0_8, %c0_9] : memref<1x128xf32, #tpu.memory_space<vmem>>, vector<1x128xf32>
    %7 = vector.broadcast %6 : vector<1x128xf32> to vector<128x128xf32>
    %8 = arith.addf %5, %7 : vector<128x128xf32>
    %9 = math.tanh %8 : vector<128x128xf32>
    %c0_10 = arith.constant 0 : index
    %c0_11 = arith.constant 0 : index
    %10 = vector.load %arg4[%c0_10, %c0_11] : memref<128x1xf32, #tpu.memory_space<vmem>>, vector<128x1xf32>
    %cst_12 = arith.constant dense<0.000000e+00> : vector<128x1xf32>
    %11 = tpu.matmul %9, %10, %cst_12 {dimension_numbers = #tpu.dot_dimension_numbers<[1], [0], [0], [1], [0, 0, 1, 1], [], []>} : vector<128x128xf32>, vector<128x1xf32>, vector<128x1xf32> -> vector<128x1xf32>
    %12 = tpu.iota {dimensions = array<i32: 0>} : vector<128x1xi32>
    %c8_i32 = arith.constant 8 : i32
    %13 = vector.broadcast %c8_i32 : i32 to vector<128x1xi32>
    %14 = arith.cmpi slt, %12, %13 : vector<128x1xi32>
    %cst_13 = arith.constant -1.000000e+30 : f32
    %15 = vector.broadcast %cst_13 : f32 to vector<128x1xf32>
    %16 = arith.select %14, %11, %15 : vector<128x1xi1>, vector<128x1xf32>
    %cst_14 = arith.constant dense<0xFF800000> : vector<1xf32>
    %17 = vector.multi_reduction <maximumf>, %16, %cst_14 [0] : vector<128x1xf32> to vector<1xf32>
    %18 = vector.shape_cast %17 : vector<1xf32> to vector<1x1xf32>
    %19 = vector.broadcast %18 : vector<1x1xf32> to vector<128x1xf32>
    %20 = arith.subf %16, %19 : vector<128x1xf32>
    %21 = math.exp %20 : vector<128x1xf32>
    %cst_15 = arith.constant dense<0.000000e+00> : vector<1xf32>
    %22 = vector.multi_reduction <add>, %21, %cst_15 [0] : vector<128x1xf32> to vector<1xf32>
    %23 = vector.shape_cast %22 : vector<1xf32> to vector<1x1xf32>
    %24 = vector.broadcast %23 : vector<1x1xf32> to vector<128x1xf32>
    %25 = arith.divf %21, %24 : vector<128x1xf32>
    %c0_16 = arith.constant 0 : index
    %c0_17 = arith.constant 0 : index
    %26 = vector.load %arg6[%c0_16, %c0_17] : memref<128x1xf32, #tpu.memory_space<vmem>>, vector<128x1xf32>
    tpu.vector_store %arg6[%c0_16, %c0_17], %25 {strides = array<i32>} : memref<128x1xf32, #tpu.memory_space<vmem>>, vector<128x1xf32>,
    return
  }
}

module attributes {stable_mosaic.version = 11 : i64} {
  func.func @_decoder_kernel(%arg0: i32, %arg1: memref<8x128xf32, #tpu.memory_space<vmem>>, %arg2: memref<128x128xf32, #tpu.memory_space<vmem>>, %arg3: memref<8x128xf32, #tpu.memory_space<vmem>>) attributes {dimension_semantics = [#tpu.dimension_semantics<parallel>], iteration_bounds = array<i64: 2>, scalar_prefetch = 0 : i64, scratch_operands = 0 : i64, tpu.core_type = #tpu.core_type<tc>, window_params = [{transform_indices = @transform_0, window_bounds = array<i64: 8, 128>}, {pipeline_mode = #tpu.pipeline_mode<synchronous>, transform_indices = @transform_1, window_bounds = array<i64: 128, 128>}, {transform_indices = @transform_2, window_bounds = array<i64: 8, 128>}]} {
    %c0 = arith.constant 0 : index
    %c0_0 = arith.constant 0 : index
    %0 = vector.load %arg1[%c0, %c0_0] : memref<8x128xf32, #tpu.memory_space<vmem>>, vector<8x128xf32>
    %c0_1 = arith.constant 0 : index
    %c0_2 = arith.constant 0 : index
    %1 = vector.load %arg2[%c0_1, %c0_2] : memref<128x128xf32, #tpu.memory_space<vmem>>, vector<128x128xf32>
    %cst = arith.constant dense<0.000000e+00> : vector<8x128xf32>
    %2 = tpu.matmul %0, %1, %cst {dimension_numbers = #tpu.dot_dimension_numbers<[1], [1], [0], [0], [0, 0, 1, 0], [], []>} : vector<8x128xf32>, vector<128x128xf32>, vector<8x128xf32> -> vector<8x128xf32>
    %3 = arith.negf %2 : vector<8x128xf32>
    %4 = math.exp %3 : vector<8x128xf32>
    %cst_3 = arith.constant 1.000000e+00 : f32
    %5 = vector.broadcast %cst_3 : f32 to vector<8x128xf32>
    %6 = arith.addf %5, %4 : vector<8x128xf32>
    %7 = arith.divf %5, %6 : vector<8x128xf32>
    %c0_4 = arith.constant 0 : index
    %c0_5 = arith.constant 0 : index
    %8 = vector.load %arg3[%c0_4, %c0_5] : memref<8x128xf32, #tpu.memory_space<vmem>>, vector<8x128xf32>
    tpu.vector_store %arg3[%c0_4, %c0_5], %7 {strides = array<i32>} : memref<8x128xf32, #tpu.memory_space<vmem>>, vector<8x128xf32>,
    return
  }
  func.func @transform_0(%arg0: i32) -> (i32, i32) {
    %c0_i32 = arith.constant 0 : i32
    %c0_i32_0 = arith.constant 0 : i32
    return %arg0, %c0_i32 : i32, i32
  }
  func.func @transform_1(%arg0: i32) -> (i32, i32) {
    %c0_i32 = arith.constant 0 : i32
    %c0_i32_0 = arith.constant 0 : i32
    %c0_i32_1 = arith.constant 0 : i32
    return %c0_i32, %c0_i32_0 : i32, i32
  }
  func.func @transform_2(%arg0: i32) -> (i32, i32) {
    %c0_i32 = arith.constant 0 : i32
    %c0_i32_0 = arith.constant 0 : i32
    return %arg0, %c0_i32 : i32, i32
  }
}

</mosaic_0001>

<llo_original>
// kernel: hgvae_forward.6
$region0: #{hgvae_forward.6}
  #allocation0 [shape = 'u32[]', space=smem, size = 0x4, offset = 0x4, fixed_abs, tag = 'smem constant byte address 0x4 - core index']
  #allocation1 [shape = 'u32[144,128]{1,0:T(1,128)}', space=vmem, size = 0x12000, scoped, tag = 'internal scratch']
  %s0 = inlined_call_operand.vmem [shape: f32[16,16], index: 0, kind: input, shape index: {}]
  %s1 = inlined_call_operand.vmem [shape: f32[16,128], index: 1, kind: input, shape index: {}]
  %s2 = inlined_call_operand.vmem [shape: f32[128,256], index: 2, kind: input, shape index: {}]
  %s3 = inlined_call_operand.vmem [shape: f32[1,256], index: 3, kind: input, shape index: {}]
  %s4 = inlined_call_operand.vmem [shape: f32[16,256], index: 4, kind: output, shape index: {}]
  %s5 = sld [smem:[#allocation0]]
  $region49: #{hgvae_forward.6} parent=0
    _
  %s7 = ssub.s32 1, %s5
  %s8 = scalar_select 0, %s7, %s5
  loop: start=0, step=1, limit=4
  $region2: #{hgvae_forward.6} parent=0 // loop_pre_header
    _
  $region3: #{hgvae_forward.6} parent=0 // loop_header
    %s10 = sphi 0, %s14
    %p11 = scmp.ge.s32.totalorder %s10, 4
    %s20 = sphi 0, %s22
    %s23 = sphi 0, %s20
    %s24 = sphi 0, %s23
    %s40 = sphi 0, %s24
    %s44 = sphi 0, %s44
    %s46 = sphi 0, %s44
    %s47 = sphi 0, %s46
    %s61 = sphi 0, %s47
    %s65 = sphi 0, %s65
    %s67 = sphi 0, %s65
    %s68 = sphi 0, %s67
    %s82 = sphi 0, %s68
    %s86 = sphi 0, %s86
    %s88 = sphi 0, %s86
    %s89 = sphi 0, %s88
    %s103 = sphi 0, %s89
    %s109 = sphi 0, %s111
    %s112 = sphi 0, %s109
    %s113 = sphi 0, %s112
    %s129 = sphi 0, %s113
  $region4: #{hgvae_forward.6} parent=0 // loop_header_branch
    %13 = sbr.rel (%p11) target = $region8
  $region5: #{hgvae_forward.6} parent=0 // loop_body
    %s15 = ssub.s32 %s10, 1
    %s16 = ssub.s32 %s10, 2
    %s17 = sadd.s32 %s10, 1
    %s18 = ssub.s32 %s10, %s17
    %p19 = scmp.eq.s32.totalorder %s18, 0
    %s21 = sadd.s32 %s20, 1
    %s22 = scalar_select %p19, %s20, %s21
    %p25 = pneg %p19
    %p26 = scmp.eq.s32.totalorder %s10, 1
    %p27 = por %p25, %p26
    %p28 = scmp.ne.s32.totalorder %s20, %s23
    %p29 = scmp.eq.s32.totalorder %s10, 0
    %p30 = por %p28, %p29
    %p31 = scmp.ne.s32.totalorder %s20, %s23
    %p32 = scmp.eq.s32.totalorder %s15, 1
    %p33 = por %p31, %p32
    %p34 = scmp.ne.s32.totalorder %s23, %s24
    %p35 = scmp.eq.s32.totalorder %s15, 0
    %p36 = por %p34, %p35
    %p37 = scmp.ne.s32.totalorder %s23, %s24
    %p38 = scmp.eq.s32.totalorder %s16, 1
    %p39 = por %p37, %p38
    %p41 = scmp.ne.s32.totalorder %s24, %s40
    %p42 = scmp.eq.s32.totalorder %s16, 0
    %p43 = por %p41, %p42
    %s45 = sadd.s32 %s44, 1
    %p48 = scmp.eq.s32.totalorder %s10, 1
    %p49 = scmp.ne.s32.totalorder %s44, %s46
    %p50 = scmp.eq.s32.totalorder %s10, 0
    %p51 = por %p49, %p50
    %p52 = scmp.ne.s32.totalorder %s44, %s46
    %p53 = scmp.eq.s32.totalorder %s15, 1
    %p54 = por %p52, %p53
    %p55 = scmp.ne.s32.totalorder %s46, %s47
    %p56 = scmp.eq.s32.totalorder %s15, 0
    %p57 = por %p55, %p56
    %p58 = scmp.ne.s32.totalorder %s46, %s47
    %p59 = scmp.eq.s32.totalorder %s16, 1
    %p60 = por %p58, %p59
    %p62 = scmp.ne.s32.totalorder %s47, %s61
    %p63 = scmp.eq.s32.totalorder %s16, 0
    %p64 = por %p62, %p63
    %s66 = sadd.s32 %s65, 1
    %p69 = scmp.eq.s32.totalorder %s10, 1
    %p70 = scmp.ne.s32.totalorder %s65, %s67
    %p71 = scmp.eq.s32.totalorder %s10, 0
    %p72 = por %p70, %p71
    %p73 = scmp.ne.s32.totalorder %s65, %s67
    %p74 = scmp.eq.s32.totalorder %s15, 1
    %p75 = por %p73, %p74
    %p76 = scmp.ne.s32.totalorder %s67, %s68
    %p77 = scmp.eq.s32.totalorder %s15, 0
    %p78 = por %p76, %p77
    %p79 = scmp.ne.s32.totalorder %s67, %s68
    %p80 = scmp.eq.s32.totalorder %s16, 1
    %p81 = por %p79, %p80
    %p83 = scmp.ne.s32.totalorder %s68, %s82
    %p84 = scmp.eq.s32.totalorder %s16, 0
    %p85 = por %p83, %p84
    %s87 = sadd.s32 %s86, 1
    %p90 = scmp.eq.s32.totalorder %s10, 1
    %p91 = scmp.ne.s32.totalorder %s86, %s88
    %p92 = scmp.eq.s32.totalorder %s10, 0
    %p93 = por %p91, %p92
    %p94 = scmp.ne.s32.totalorder %s86, %s88
    %p95 = scmp.eq.s32.totalorder %s15, 1
    %p96 = por %p94, %p95
    %p97 = scmp.ne.s32.totalorder %s88, %s89
    %p98 = scmp.eq.s32.totalorder %s15, 0
    %p99 = por %p97, %p98
    %p100 = scmp.ne.s32.totalorder %s88, %s89
    %p101 = scmp.eq.s32.totalorder %s16, 1
    %p102 = por %p100, %p101
    %p104 = scmp.ne.s32.totalorder %s89, %s103
    %p105 = scmp.eq.s32.totalorder %s16, 0
    %p106 = por %p104, %p105
    %s107 = ssub.s32 %s10, %s17
    %p108 = scmp.eq.s32.totalorder %s107, 0
    %s110 = sadd.s32 %s109, 1
    %s111 = scalar_select %p108, %s109, %s110
    %p114 = pneg %p108
    %p115 = scmp.eq.s32.totalorder %s10, 1
    %p116 = por %p114, %p115
    %p117 = scmp.ne.s32.totalorder %s109, %s112
    %p118 = scmp.eq.s32.totalorder %s10, 0
    %p119 = por %p117, %p118
    %p120 = scmp.ne.s32.totalorder %s109, %s112
    %p121 = scmp.eq.s32.totalorder %s15, 1
    %p122 = por %p120, %p121
    %p123 = scmp.ne.s32.totalorder %s112, %s113
    %p124 = scmp.eq.s32.totalorder %s15, 0
    %p125 = por %p123, %p124
    %p126 = scmp.ne.s32.totalorder %s112, %s113
    %p127 = scmp.eq.s32.totalorder %s16, 1
    %p128 = por %p126, %p127
    %p130 = scmp.ne.s32.totalorder %s113, %s129
    %p131 = scmp.eq.s32.totalorder %s16, 0
    %p132 = por %p130, %p131
    %p133 = scmp.le.s32.totalorder 1, %s10
    %p134 = scmp.lt.s32.totalorder %s10, 3
    %p135 = pnand %p133, %p134
    %p136 = pneg %p135
    // Predicated region
    $region9: #{hgvae_forward.6} parent=5 // pred_check
      _
    $region10: #{hgvae_forward.6} parent=5 // pred_check_branch
      %138 = sbr.rel (%p135) target = $region12
    $region11: #{hgvae_forward.6} parent=5 // pred_region
      %s139 = ssub.s32 %s10, 1
      // Predicated region
      $region13: #{hgvae_forward.6} parent=11 // pred_check
        %p140 = pneg %p57
      $region14: #{hgvae_forward.6} parent=11 // pred_check_branch
        %142 = sbr.rel (%p140) target = $region16
      $region15: #{hgvae_forward.6} parent=11 // pred_region
        _
      $region16: #{hgvae_forward.6} parent=11 // pred_fallthru
        _
      // Predicated region
      $region17: #{hgvae_forward.6} parent=11 // pred_check
        %p143 = pneg %p78
      $region18: #{hgvae_forward.6} parent=11 // pred_check_branch
        %145 = sbr.rel (%p143) target = $region20
      $region19: #{hgvae_forward.6} parent=11 // pred_region
        _
      $region20: #{hgvae_forward.6} parent=11 // pred_fallthru
        _
      // Predicated region
      $region21: #{hgvae_forward.6} parent=11 // pred_check
        %p146 = pneg %p99
      $region22: #{hgvae_forward.6} parent=11 // pred_check_branch
        %148 = sbr.rel (%p146) target = $region24
      $region23: #{hgvae_forward.6} parent=11 // pred_region
        _
      $region24: #{hgvae_forward.6} parent=11 // pred_fallthru
        _
    $region12: #{hgvae_forward.6} parent=5 // pred_fallthru
      _
    %p149 = scmp.lt.s32.totalorder %s10, 2
    // Predicated region
    $region25: #{hgvae_forward.6} parent=5 // pred_check
      %p150 = pneg %p149
    $region26: #{hgvae_forward.6} parent=5 // pred_check_branch
      %152 = sbr.rel (%p150) target = $region28
    $region27: #{hgvae_forward.6} parent=5 // pred_region
      // Predicated region
      $region29: #{hgvae_forward.6} parent=27 // pred_check
        %p153 = pneg %p30
      $region30: #{hgvae_forward.6} parent=27 // pred_check_branch
        %155 = sbr.rel (%p153) target = $region32
      $region31: #{hgvae_forward.6} parent=27 // pred_region
        %p156 = scmp.lt.s32.totalorder %s10, 1
        %s157 = scalar_select %p156, %s10, 1
        %s158 = smul.addr %s157, 8
        %s159 = scalar_lea.vmem %s0, %s158
      $region32: #{hgvae_forward.6} parent=27 // pred_fallthru
        _
    $region28: #{hgvae_forward.6} parent=5 // pred_fallthru
      _
    %p160 = scmp.le.s32.totalorder 1, %s10
    %p161 = scmp.lt.s32.totalorder %s10, 3
    %p162 = pnand %p160, %p161
    %p163 = pneg %p162
    // Predicated region
    $region33: #{hgvae_forward.6} parent=5 // pred_check
      _
    $region34: #{hgvae_forward.6} parent=5 // pred_check_branch
      %165 = sbr.rel (%p162) target = $region36
    $region35: #{hgvae_forward.6} parent=5 // pred_region
      %s166 = ssub.s32 %s10, 1
      %p167 = scmp.lt.s32.totalorder %s15, 1
      %s168 = scalar_select %p167, %s15, 1
      %s169 = smul.addr %s168, 8
      %s170 = scalar_lea.vmem %s0, %s169
      %p171 = pneg %p36
      %p172 = pneg %p33
      %p173 = pneg %p57
      %p174 = pneg %p54
      %p175 = pneg %p78
      %p176 = pneg %p75
      %p177 = pneg %p99
      %p178 = pneg %p96
      %p179 = pneg %p125
      %p180 = pneg %p122
      %p181 = scmp.lt.s32.totalorder %s15, 1
      %s182 = scalar_select %p181, %s15, 1
      %s183 = smul.addr %s182, 2
      %s184 = smul.addr %s183, 8
      %s185 = scalar_lea.vmem %s4, %s184
      %p186 = scmp.lt.s32.totalorder %s15, 1
      %s187 = scalar_select %p186, %s15, 1
      %s188 = smul.addr %s187, 8
      %s189 = scalar_lea.vmem %s0, %s188
      %p190 = scmp.lt.s32.totalorder %s15, 1
      %s191 = scalar_select %p190, %s15, 1
      %s192 = smul.addr %s191, 2
      %s193 = smul.addr %s192, 8
      %s194 = scalar_lea.vmem %s4, %s193
      %v195 = vld [vmem:[%s189] sm:$0xff]
      %v196 = vld [vmem:[%s1] sm:$0xff]
      %v197 = vld [vmem:[%s1 + $0x8] sm:$0xff]
      %vm198 = vcmask 130048
      %v200 = vsel %vm198, %v195, 0
      %202 = vmatprep.subr.mxu0 0.0
      %203 = vmatpush1.msra.mxu0 %v196
      %204 = vmatprep.subr.mxu0 0.0
      %205 = vmatpush1.msra.mxu0 %v197
      %206 = vmatprep.subr.mxu0 0.0
      %207 = vmatpush1.msra.mxu0 0.0
      %208 = vmatprep.subr.mxu0 0.0
      %209 = vmatpush1.msra.mxu0 0.0
      %210 = vmatprep.subr.mxu0 0.0
      %211 = vmatpush1.msra.mxu0 0.0
      %212 = vmatprep.subr.mxu0 0.0
      %213 = vmatpush1.msra.mxu0 0.0
      %214 = vmatprep.subr.mxu0 0.0
      %215 = vmatpush1.msra.mxu0 0.0
      %216 = vmatprep.subr.mxu0 0.0
      %217 = vmatpush1.msra.mxu0 0.0
      %218 = vmatprep.subr.mxu0 0.0
      %219 = vmatpush1.msra.mxu0 0.0
      %220 = vmatprep.subr.mxu0 0.0
      %221 = vmatpush1.msra.mxu0 0.0
      %222 = vmatprep.subr.mxu0 0.0
      %223 = vmatpush1.msra.mxu0 0.0
      %224 = vmatprep.subr.mxu0 0.0
      %225 = vmatpush1.msra.mxu0 0.0
      %226 = vmatprep.subr.mxu0 0.0
      %227 = vmatpush1.msra.mxu0 0.0
      %228 = vmatprep.subr.mxu0 0.0
      %229 = vmatpush1.msra.mxu0 0.0
      %230 = vmatprep.subr.mxu0 0.0
      %231 = vmatpush1.msra.mxu0 0.0
      %232 = vmatprep.subr.mxu0 0.0
      %233 = vmatpush1.msra.mxu0 0.0
      %234 = vmatprep.subr.mxu0 0.0
      %235 = vmatpush1.msra.mxu0 0.0
      %236 = vmatprep.subr.mxu0 0.0
      %237 = vmatpush1.msra.mxu0 0.0
      %238 = vmatprep.subr.mxu0 0.0
      %239 = vmatpush1.msra.mxu0 0.0
      %240 = vmatprep.subr.mxu0 0.0
      %241 = vmatpush1.msra.mxu0 0.0
      %242 = vmatprep.subr.mxu0 0.0
      %243 = vmatpush1.msra.mxu0 0.0
      %244 = vmatprep.subr.mxu0 0.0
      %245 = vmatpush1.msra.mxu0 0.0
      %246 = vmatprep.subr.mxu0 0.0
      %247 = vmatpush1.msra.mxu0 0.0
      %248 = vmatprep.subr.mxu0 0.0
      %249 = vmatpush1.msra.mxu0 0.0
      %250 = vmatprep.subr.mxu0 0.0
      %251 = vmatpush1.msra.mxu0 0.0
      %252 = vmatprep.subr.mxu0 0.0
      %253 = vmatpush1.msra.mxu0 0.0
      %254 = vmatprep.subr.mxu0 0.0
      %255 = vmatpush1.msra.mxu0 0.0
      %256 = vmatprep.subr.mxu0 0.0
      %257 = vmatpush1.msra.mxu0 0.0
      %258 = vmatprep.subr.mxu0 0.0
      %259 = vmatpush1.msra.mxu0 0.0
      %260 = vmatprep.subr.mxu0 0.0
      %261 = vmatpush1.msra.mxu0 0.0
      %262 = vmatprep.subr.mxu0 0.0
      %263 = vmatpush1.msra.mxu0 0.0
      %264 = vmatprep.subr.mxu0 0.0
      %265 = vmatpush1.msra.mxu0 0.0
      %266 = vmatprep.mubr.f32.mxu0 0.0
      %267 = vmatmul.mubr.f32.gmra.mrb[0].mxu0 %v200
      %v268 = vpop.f32.mrb[0].mxu0
      %v269 = vadd.f32 0.0, %v268
      %v270 = vpop.f32.mrb[0].mxu0
      %271 = vdwg.mxu0
      %v272 = vmax.f32 %v269, 0.0
      %v273 = vld [vmem:[%s2] sm:$0xff]
      %v274 = vld [vmem:[%s2 + $0x8] sm:$0xff]
      %v275 = vld [vmem:[%s2 + $0x10] sm:$0xff]
      %v276 = vld [vmem:[%s2 + $0x18] sm:$0xff]
      %v277 = vld [vmem:[%s2 + $0x20] sm:$0xff]
      %v278 = vld [vmem:[%s2 + $0x28] sm:$0xff]
      %v279 = vld [vmem:[%s2 + $0x30] sm:$0xff]
      %v280 = vld [vmem:[%s2 + $0x38] sm:$0xff]
      %v281 = vld [vmem:[%s2 + $0x40] sm:$0xff]
      %v282 = vld [vmem:[%s2 + $0x48] sm:$0xff]
      %v283 = vld [vmem:[%s2 + $0x50] sm:$0xff]
      %v284 = vld [vmem:[%s2 + $0x58] sm:$0xff]
      %v285 = vld [vmem:[%s2 + $0x60] sm:$0xff]
      %v286 = vld [vmem:[%s2 + $0x68] sm:$0xff]
      %v287 = vld [vmem:[%s2 + $0x70] sm:$0xff]
      %v288 = vld [vmem:[%s2 + $0x78] sm:$0xff]
      %v289 = vld [vmem:[%s2 + $0x80] sm:$0xff]
      %v290 = vld [vmem:[%s2 + $0x88] sm:$0xff]
      %v291 = vld [vmem:[%s2 + $0x90] sm:$0xff]
      %v292 = vld [vmem:[%s2 + $0x98] sm:$0xff]
      %v293 = vld [vmem:[%s2 + $0xa0] sm:$0xff]
      %v294 = vld [vmem:[%s2 + $0xa8] sm:$0xff]
      %v295 = vld [vmem:[%s2 + $0xb0] sm:$0xff]
      %v296 = vld [vmem:[%s2 + $0xb8] sm:$0xff]
      %v297 = vld [vmem:[%s2 + $0xc0] sm:$0xff]
      %v298 = vld [vmem:[%s2 + $0xc8] sm:$0xff]
      %v299 = vld [vmem:[%s2 + $0xd0] sm:$0xff]
      %v300 = vld [vmem:[%s2 + $0xd8] sm:$0xff]
      %v301 = vld [vmem:[%s2 + $0xe0] sm:$0xff]
      %v302 = vld [vmem:[%s2 + $0xe8] sm:$0xff]
      %v303 = vld [vmem:[%s2 + $0xf0] sm:$0xff]
      %v304 = vld [vmem:[%s2 + $0xf8] sm:$0xff]
      %v305 = vld [vmem:[%s3] sm:$0x3]
      %v307 = vlaneseq
      %v308 = vshrl.u32 %v307, 7
      %v309 = vsub.s32 0, %v308
      %v310 = vrot.slane %v305, %v309
      %v311 = vlaneseq
      %v312 = vshrl.u32 %v311, 7
      %v313 = vsub.s32 1, %v312
      %v314 = vrot.slane %v305, %v313
      %317 = vmatprep.subr.mxu0 %v274
      %318 = vmatpush1.msra.mxu0 %v273
      %319 = vmatprep.subr.mxu0 %v276
      %320 = vmatpush1.msra.mxu0 %v275
      %321 = vmatprep.subr.mxu0 %v278
      %322 = vmatpush1.msra.mxu0 %v277
      %323 = vmatprep.subr.mxu0 %v280
      %324 = vmatpush1.msra.mxu0 %v279
      %325 = vmatprep.subr.mxu0 %v282
      %326 = vmatpush1.msra.mxu0 %v281
      %327 = vmatprep.subr.mxu0 %v284
      %328 = vmatpush1.msra.mxu0 %v283
      %329 = vmatprep.subr.mxu0 %v286
      %330 = vmatpush1.msra.mxu0 %v285
      %331 = vmatprep.subr.mxu0 %v288
      %332 = vmatpush1.msra.mxu0 %v287
      %333 = vmatprep.subr.mxu0 %v290
      %334 = vmatpush1.msra.mxu0 %v289
      %335 = vmatprep.subr.mxu0 %v292
      %336 = vmatpush1.msra.mxu0 %v291
      %337 = vmatprep.subr.mxu0 %v294
      %338 = vmatpush1.msra.mxu0 %v293
      %339 = vmatprep.subr.mxu0 %v296
      %340 = vmatpush1.msra.mxu0 %v295
      %341 = vmatprep.subr.mxu0 %v298
      %342 = vmatpush1.msra.mxu0 %v297
      %343 = vmatprep.subr.mxu0 %v300
      %344 = vmatpush1.msra.mxu0 %v299
      %345 = vmatprep.subr.mxu0 %v302
      %346 = vmatpush1.msra.mxu0 %v301
      %347 = vmatprep.subr.mxu0 %v304
      %348 = vmatpush1.msra.mxu0 %v303
      %349 = vmatprep.subr.mxu0 0.0
      %350 = vmatpush1.msra.mxu0 0.0
      %351 = vmatprep.subr.mxu0 0.0
      %352 = vmatpush1.msra.mxu0 0.0
      %353 = vmatprep.subr.mxu0 0.0
      %354 = vmatpush1.msra.mxu0 0.0
      %355 = vmatprep.subr.mxu0 0.0
      %356 = vmatpush1.msra.mxu0 0.0
      %357 = vmatprep.subr.mxu0 0.0
      %358 = vmatpush1.msra.mxu0 0.0
      %359 = vmatprep.subr.mxu0 0.0
      %360 = vmatpush1.msra.mxu0 0.0
      %361 = vmatprep.subr.mxu0 0.0
      %362 = vmatpush1.msra.mxu0 0.0
      %363 = vmatprep.subr.mxu0 0.0
      %364 = vmatpush1.msra.mxu0 0.0
      %365 = vmatprep.subr.mxu0 0.0
      %366 = vmatpush1.msra.mxu0 0.0
      %367 = vmatprep.subr.mxu0 0.0
      %368 = vmatpush1.msra.mxu0 0.0
      %369 = vmatprep.subr.mxu0 0.0
      %370 = vmatpush1.msra.mxu0 0.0
      %371 = vmatprep.subr.mxu0 0.0
      %372 = vmatpush1.msra.mxu0 0.0
      %373 = vmatprep.subr.mxu0 0.0
      %374 = vmatpush1.msra.mxu0 0.0
      %375 = vmatprep.subr.mxu0 0.0
      %376 = vmatpush1.msra.mxu0 0.0
      %377 = vmatprep.subr.mxu0 0.0
      %378 = vmatpush1.msra.mxu0 0.0
      %379 = vmatprep.subr.mxu0 0.0
      %380 = vmatpush1.msra.mxu0 0.0
      %381 = vmatprep.mubr.f32.mxu0 0.0
      %382 = vmatmul.mubr.f32.gmra.mrb[0].mxu0 %v272
      %v383 = vpop.f32.mrb[0].mxu0
      %v384 = vadd.f32 %v310, %v383
      %v385 = vpop.f32.mrb[0].mxu0
      %v386 = vadd.f32 %v314, %v385
      %387 = vdwg.mxu0
      %388 = vst [vmem:[%s194] sm:$0xff] %v384
      %389 = vst [vmem:[%s194 + $0x8] sm:$0xff] %v386
      %p390 = scmp.lt.s32.totalorder %s15, 1
      %s391 = scalar_select %p390, %s15, 1
      %s392 = smul.addr %s391, 2
      %s393 = smul.addr %s392, 8
      %s394 = scalar_lea.vmem %s4, %s393
      // Predicated region
      $region37: #{hgvae_forward.6} parent=35 // pred_check
        %p395 = pneg %p122
      $region38: #{hgvae_forward.6} parent=35 // pred_check_branch
        %397 = sbr.rel (%p395) target = $region40
      $region39: #{hgvae_forward.6} parent=35 // pred_region
        _
      $region40: #{hgvae_forward.6} parent=35 // pred_fallthru
        _
    $region36: #{hgvae_forward.6} parent=5 // pred_fallthru
      _
    %p398 = scmp.le.s32.totalorder 2, %s10
    // Predicated region
    $region41: #{hgvae_forward.6} parent=5 // pred_check
      %p399 = pneg %p398
    $region42: #{hgvae_forward.6} parent=5 // pred_check_branch
      %401 = sbr.rel (%p399) target = $region44
    $region43: #{hgvae_forward.6} parent=5 // pred_region
      %s402 = ssub.s32 %s10, 2
      // Predicated region
      $region45: #{hgvae_forward.6} parent=43 // pred_check
        %p403 = pneg %p128
      $region46: #{hgvae_forward.6} parent=43 // pred_check_branch
        %405 = sbr.rel (%p403) target = $region48
      $region47: #{hgvae_forward.6} parent=43 // pred_region
        %p406 = scmp.lt.s32.totalorder %s16, 1
        %s407 = scalar_select %p406, %s16, 1
        %s408 = smul.addr %s407, 2
        %s409 = smul.addr %s408, 8
        %s410 = scalar_lea.vmem %s4, %s409
      $region48: #{hgvae_forward.6} parent=43 // pred_fallthru
        _
    $region44: #{hgvae_forward.6} parent=5 // pred_fallthru
      _
  $region6: #{hgvae_forward.6} parent=0 // loop_footer
    %s14 = sadd.s32 1, %s10
  $region7: #{hgvae_forward.6} parent=0 // loop_footer_branch
    %9 = sbr.rel target = $region3
  $region8: #{hgvae_forward.6} parent=0 // loop_exit
    _

// kernel: hgvae_forward.7
$region0: #{hgvae_forward.7}
  #allocation0 [shape = 'u32[]', space=smem, size = 0x4, offset = 0x4, fixed_abs, tag = 'smem constant byte address 0x4 - core index']
  #allocation1 [shape = 'u32[144,128]{1,0:T(1,128)}', space=vmem, size = 0x12000, scoped, tag = 'internal scratch']
  %s0 = inlined_call_operand.vmem [shape: f32[16,16], index: 0, kind: input, shape index: {}]
  %s1 = inlined_call_operand.vmem [shape: f32[16,256], index: 1, kind: input, shape index: {}]
  %s2 = inlined_call_operand.vmem [shape: f32[16,256], index: 2, kind: output, shape index: {}]
  %s3 = sld [smem:[#allocation0]]
  $region41: #{hgvae_forward.7} parent=0
    _
  %s5 = ssub.s32 1, %s3
  %s6 = scalar_select 0, %s5, %s3
  loop: start=0, step=1, limit=4
  $region2: #{hgvae_forward.7} parent=0 // loop_pre_header
    _
  $region3: #{hgvae_forward.7} parent=0 // loop_header
    %s8 = sphi 0, %s12
    %p9 = scmp.ge.s32.totalorder %s8, 4
    %s18 = sphi 0, %s20
    %s21 = sphi 0, %s18
    %s22 = sphi 0, %s21
    %s38 = sphi 0, %s22
    %s42 = sphi 0, %s42
    %s44 = sphi 0, %s42
    %s45 = sphi 0, %s44
    %s59 = sphi 0, %s45
    %s65 = sphi 0, %s67
    %s68 = sphi 0, %s65
    %s69 = sphi 0, %s68
    %s85 = sphi 0, %s69
  $region4: #{hgvae_forward.7} parent=0 // loop_header_branch
    %11 = sbr.rel (%p9) target = $region8
  $region5: #{hgvae_forward.7} parent=0 // loop_body
    %s13 = ssub.s32 %s8, 1
    %s14 = ssub.s32 %s8, 2
    %s15 = sadd.s32 %s8, 1
    %s16 = ssub.s32 %s8, %s15
    %p17 = scmp.eq.s32.totalorder %s16, 0
    %s19 = sadd.s32 %s18, 1
    %s20 = scalar_select %p17, %s18, %s19
    %p23 = pneg %p17
    %p24 = scmp.eq.s32.totalorder %s8, 1
    %p25 = por %p23, %p24
    %p26 = scmp.ne.s32.totalorder %s18, %s21
    %p27 = scmp.eq.s32.totalorder %s8, 0
    %p28 = por %p26, %p27
    %p29 = scmp.ne.s32.totalorder %s18, %s21
    %p30 = scmp.eq.s32.totalorder %s13, 1
    %p31 = por %p29, %p30
    %p32 = scmp.ne.s32.totalorder %s21, %s22
    %p33 = scmp.eq.s32.totalorder %s13, 0
    %p34 = por %p32, %p33
    %p35 = scmp.ne.s32.totalorder %s21, %s22
    %p36 = scmp.eq.s32.totalorder %s14, 1
    %p37 = por %p35, %p36
    %p39 = scmp.ne.s32.totalorder %s22, %s38
    %p40 = scmp.eq.s32.totalorder %s14, 0
    %p41 = por %p39, %p40
    %s43 = sadd.s32 %s42, 1
    %p46 = scmp.eq.s32.totalorder %s8, 1
    %p47 = scmp.ne.s32.totalorder %s42, %s44
    %p48 = scmp.eq.s32.totalorder %s8, 0
    %p49 = por %p47, %p48
    %p50 = scmp.ne.s32.totalorder %s42, %s44
    %p51 = scmp.eq.s32.totalorder %s13, 1
    %p52 = por %p50, %p51
    %p53 = scmp.ne.s32.totalorder %s44, %s45
    %p54 = scmp.eq.s32.totalorder %s13, 0
    %p55 = por %p53, %p54
    %p56 = scmp.ne.s32.totalorder %s44, %s45
    %p57 = scmp.eq.s32.totalorder %s14, 1
    %p58 = por %p56, %p57
    %p60 = scmp.ne.s32.totalorder %s45, %s59
    %p61 = scmp.eq.s32.totalorder %s14, 0
    %p62 = por %p60, %p61
    %s63 = ssub.s32 %s8, %s15
    %p64 = scmp.eq.s32.totalorder %s63, 0
    %s66 = sadd.s32 %s65, 1
    %s67 = scalar_select %p64, %s65, %s66
    %p70 = pneg %p64
    %p71 = scmp.eq.s32.totalorder %s8, 1
    %p72 = por %p70, %p71
    %p73 = scmp.ne.s32.totalorder %s65, %s68
    %p74 = scmp.eq.s32.totalorder %s8, 0
    %p75 = por %p73, %p74
    %p76 = scmp.ne.s32.totalorder %s65, %s68
    %p77 = scmp.eq.s32.totalorder %s13, 1
    %p78 = por %p76, %p77
    %p79 = scmp.ne.s32.totalorder %s68, %s69
    %p80 = scmp.eq.s32.totalorder %s13, 0
    %p81 = por %p79, %p80
    %p82 = scmp.ne.s32.totalorder %s68, %s69
    %p83 = scmp.eq.s32.totalorder %s14, 1
    %p84 = por %p82, %p83
    %p86 = scmp.ne.s32.totalorder %s69, %s85
    %p87 = scmp.eq.s32.totalorder %s14, 0
    %p88 = por %p86, %p87
    %p89 = scmp.le.s32.totalorder 1, %s8
    %p90 = scmp.lt.s32.totalorder %s8, 3
    %p91 = pnand %p89, %p90
    %p92 = pneg %p91
    // Predicated region
    $region9: #{hgvae_forward.7} parent=5 // pred_check
      _
    $region10: #{hgvae_forward.7} parent=5 // pred_check_branch
      %94 = sbr.rel (%p91) target = $region12
    $region11: #{hgvae_forward.7} parent=5 // pred_region
      %s95 = ssub.s32 %s8, 1
      // Predicated region
      $region13: #{hgvae_forward.7} parent=11 // pred_check
        %p96 = pneg %p55
      $region14: #{hgvae_forward.7} parent=11 // pred_check_branch
        %98 = sbr.rel (%p96) target = $region16
      $region15: #{hgvae_forward.7} parent=11 // pred_region
        _
      $region16: #{hgvae_forward.7} parent=11 // pred_fallthru
        _
    $region12: #{hgvae_forward.7} parent=5 // pred_fallthru
      _
    %p99 = scmp.lt.s32.totalorder %s8, 2
    // Predicated region
    $region17: #{hgvae_forward.7} parent=5 // pred_check
      %p100 = pneg %p99
    $region18: #{hgvae_forward.7} parent=5 // pred_check_branch
      %102 = sbr.rel (%p100) target = $region20
    $region19: #{hgvae_forward.7} parent=5 // pred_region
      // Predicated region
      $region21: #{hgvae_forward.7} parent=19 // pred_check
        %p103 = pneg %p28
      $region22: #{hgvae_forward.7} parent=19 // pred_check_branch
        %105 = sbr.rel (%p103) target = $region24
      $region23: #{hgvae_forward.7} parent=19 // pred_region
        %p106 = scmp.lt.s32.totalorder %s8, 1
        %s107 = scalar_select %p106, %s8, 1
        %s108 = smul.addr %s107, 8
        %s109 = scalar_lea.vmem %s0, %s108
      $region24: #{hgvae_forward.7} parent=19 // pred_fallthru
        _
    $region20: #{hgvae_forward.7} parent=5 // pred_fallthru
      _
    %p110 = scmp.le.s32.totalorder 1, %s8
    %p111 = scmp.lt.s32.totalorder %s8, 3
    %p112 = pnand %p110, %p111
    %p113 = pneg %p112
    // Predicated region
    $region25: #{hgvae_forward.7} parent=5 // pred_check
      _
    $region26: #{hgvae_forward.7} parent=5 // pred_check_branch
      %115 = sbr.rel (%p112) target = $region28
    $region27: #{hgvae_forward.7} parent=5 // pred_region
      %s116 = ssub.s32 %s8, 1
      %p117 = scmp.lt.s32.totalorder %s13, 1
      %s118 = scalar_select %p117, %s13, 1
      %s119 = smul.addr %s118, 8
      %s120 = scalar_lea.vmem %s0, %s119
      %p121 = pneg %p34
      %p122 = pneg %p31
      %p123 = pneg %p55
      %p124 = pneg %p52
      %p125 = pneg %p81
      %p126 = pneg %p78
      %p127 = scmp.lt.s32.totalorder %s13, 1
      %s128 = scalar_select %p127, %s13, 1
      %s129 = smul.addr %s128, 2
      %s130 = smul.addr %s129, 8
      %s131 = scalar_lea.vmem %s2, %s130
      %p132 = scmp.lt.s32.totalorder %s13, 1
      %s133 = scalar_select %p132, %s13, 1
      %s134 = smul.addr %s133, 8
      %s135 = scalar_lea.vmem %s0, %s134
      %p136 = scmp.lt.s32.totalorder %s13, 1
      %s137 = scalar_select %p136, %s13, 1
      %s138 = smul.addr %s137, 2
      %s139 = smul.addr %s138, 8
      %s140 = scalar_lea.vmem %s2, %s139
      %v141 = vld [vmem:[%s135] sm:$0xff]
      %v142 = vld [vmem:[%s1] sm:$0xff]
      %v143 = vld [vmem:[%s1 + $0x8] sm:$0xff]
      %v144 = vld [vmem:[%s1 + $0x10] sm:$0xff]
      %v145 = vld [vmem:[%s1 + $0x18] sm:$0xff]
      %vm146 = vcmask 130048
      %v148 = vsel %vm146, %v141, 0
      %150 = vmatprep.subr.mxu0 %v143
      %151 = vmatpush1.msra.mxu0 %v142
      %152 = vmatprep.subr.mxu0 %v145
      %153 = vmatpush1.msra.mxu0 %v144
      %154 = vmatprep.subr.mxu0 0.0
      %155 = vmatpush1.msra.mxu0 0.0
      %156 = vmatprep.subr.mxu0 0.0
      %157 = vmatpush1.msra.mxu0 0.0
      %158 = vmatprep.subr.mxu0 0.0
      %159 = vmatpush1.msra.mxu0 0.0
      %160 = vmatprep.subr.mxu0 0.0
      %161 = vmatpush1.msra.mxu0 0.0
      %162 = vmatprep.subr.mxu0 0.0
      %163 = vmatpush1.msra.mxu0 0.0
      %164 = vmatprep.subr.mxu0 0.0
      %165 = vmatpush1.msra.mxu0 0.0
      %166 = vmatprep.subr.mxu0 0.0
      %167 = vmatpush1.msra.mxu0 0.0
      %168 = vmatprep.subr.mxu0 0.0
      %169 = vmatpush1.msra.mxu0 0.0
      %170 = vmatprep.subr.mxu0 0.0
      %171 = vmatpush1.msra.mxu0 0.0
      %172 = vmatprep.subr.mxu0 0.0
      %173 = vmatpush1.msra.mxu0 0.0
      %174 = vmatprep.subr.mxu0 0.0
      %175 = vmatpush1.msra.mxu0 0.0
      %176 = vmatprep.subr.mxu0 0.0
      %177 = vmatpush1.msra.mxu0 0.0
      %178 = vmatprep.subr.mxu0 0.0
      %179 = vmatpush1.msra.mxu0 0.0
      %180 = vmatprep.subr.mxu0 0.0
      %181 = vmatpush1.msra.mxu0 0.0
      %182 = vmatprep.subr.mxu0 0.0
      %183 = vmatpush1.msra.mxu0 0.0
      %184 = vmatprep.subr.mxu0 0.0
      %185 = vmatpush1.msra.mxu0 0.0
      %186 = vmatprep.subr.mxu0 0.0
      %187 = vmatpush1.msra.mxu0 0.0
      %188 = vmatprep.subr.mxu0 0.0
      %189 = vmatpush1.msra.mxu0 0.0
      %190 = vmatprep.subr.mxu0 0.0
      %191 = vmatpush1.msra.mxu0 0.0
      %192 = vmatprep.subr.mxu0 0.0
      %193 = vmatpush1.msra.mxu0 0.0
      %194 = vmatprep.subr.mxu0 0.0
      %195 = vmatpush1.msra.mxu0 0.0
      %196 = vmatprep.subr.mxu0 0.0
      %197 = vmatpush1.msra.mxu0 0.0
      %198 = vmatprep.subr.mxu0 0.0
      %199 = vmatpush1.msra.mxu0 0.0
      %200 = vmatprep.subr.mxu0 0.0
      %201 = vmatpush1.msra.mxu0 0.0
      %202 = vmatprep.subr.mxu0 0.0
      %203 = vmatpush1.msra.mxu0 0.0
      %204 = vmatprep.subr.mxu0 0.0
      %205 = vmatpush1.msra.mxu0 0.0
      %206 = vmatprep.subr.mxu0 0.0
      %207 = vmatpush1.msra.mxu0 0.0
      %208 = vmatprep.subr.mxu0 0.0
      %209 = vmatpush1.msra.mxu0 0.0
      %210 = vmatprep.subr.mxu0 0.0
      %211 = vmatpush1.msra.mxu0 0.0
      %212 = vmatprep.subr.mxu0 0.0
      %213 = vmatpush1.msra.mxu0 0.0
      %214 = vmatprep.mubr.f32.mxu0 0.0
      %215 = vmatmul.mubr.f32.gmra.mrb[0].mxu0 %v148
      %v216 = vpop.f32.mrb[0].mxu0
      %v217 = vadd.f32 0.0, %v216
      %v218 = vpop.f32.mrb[0].mxu0
      %v219 = vadd.f32 0.0, %v218
      %220 = vdwg.mxu0
      %221 = vst [vmem:[%s140] sm:$0xff] %v217
      %222 = vst [vmem:[%s140 + $0x8] sm:$0xff] %v219
      %p223 = scmp.lt.s32.totalorder %s13, 1
      %s224 = scalar_select %p223, %s13, 1
      %s225 = smul.addr %s224, 2
      %s226 = smul.addr %s225, 8
      %s227 = scalar_lea.vmem %s2, %s226
      // Predicated region
      $region29: #{hgvae_forward.7} parent=27 // pred_check
        %p228 = pneg %p78
      $region30: #{hgvae_forward.7} parent=27 // pred_check_branch
        %230 = sbr.rel (%p228) target = $region32
      $region31: #{hgvae_forward.7} parent=27 // pred_region
        _
      $region32: #{hgvae_forward.7} parent=27 // pred_fallthru
        _
    $region28: #{hgvae_forward.7} parent=5 // pred_fallthru
      _
    %p231 = scmp.le.s32.totalorder 2, %s8
    // Predicated region
    $region33: #{hgvae_forward.7} parent=5 // pred_check
      %p232 = pneg %p231
    $region34: #{hgvae_forward.7} parent=5 // pred_check_branch
      %234 = sbr.rel (%p232) target = $region36
    $region35: #{hgvae_forward.7} parent=5 // pred_region
      %s235 = ssub.s32 %s8, 2
      // Predicated region
      $region37: #{hgvae_forward.7} parent=35 // pred_check
        %p236 = pneg %p84
      $region38: #{hgvae_forward.7} parent=35 // pred_check_branch
        %238 = sbr.rel (%p236) target = $region40
      $region39: #{hgvae_forward.7} parent=35 // pred_region
        %p239 = scmp.lt.s32.totalorder %s14, 1
        %s240 = scalar_select %p239, %s14, 1
        %s241 = smul.addr %s240, 2
        %s242 = smul.addr %s241, 8
        %s243 = scalar_lea.vmem %s2, %s242
      $region40: #{hgvae_forward.7} parent=35 // pred_fallthru
        _
    $region36: #{hgvae_forward.7} parent=5 // pred_fallthru
      _
  $region6: #{hgvae_forward.7} parent=0 // loop_footer
    %s12 = sadd.s32 1, %s8
  $region7: #{hgvae_forward.7} parent=0 // loop_footer_branch
    %7 = sbr.rel target = $region3
  $region8: #{hgvae_forward.7} parent=0 // loop_exit
    _

// kernel: hgvae_forward.5
$region0: #{hgvae_forward.5}
  #allocation0 [shape = 'u32[]', space=smem, size = 0x4, offset = 0x4, fixed_abs, tag = 'smem constant byte address 0x4 - core index']
  #allocation1 [shape = 'u32[144,128]{1,0:T(1,128)}', space=vmem, size = 0x12000, scoped, tag = 'internal scratch']
  %s0 = inlined_call_operand.vmem [shape: f32[16,128], index: 0, kind: input, shape index: {}]
  %s1 = inlined_call_operand.vmem [shape: f32[128,128], index: 1, kind: input, shape index: {}]
  %s2 = inlined_call_operand.vmem [shape: f32[1,128], index: 2, kind: input, shape index: {}]
  %s3 = inlined_call_operand.vmem [shape: f32[16,128], index: 3, kind: output, shape index: {}]
  %s4 = sld [smem:[#allocation0]]
  $region45: #{hgvae_forward.5} parent=0
    _
  %s6 = ssub.s32 1, %s4
  %s7 = scalar_select 0, %s6, %s4
  loop: start=0, step=1, limit=4
  $region2: #{hgvae_forward.5} parent=0 // loop_pre_header
    _
  $region3: #{hgvae_forward.5} parent=0 // loop_header
    %s9 = sphi 0, %s13
    %p10 = scmp.ge.s32.totalorder %s9, 4
    %s19 = sphi 0, %s21
    %s22 = sphi 0, %s19
    %s23 = sphi 0, %s22
    %s39 = sphi 0, %s23
    %s43 = sphi 0, %s43
    %s45 = sphi 0, %s43
    %s46 = sphi 0, %s45
    %s60 = sphi 0, %s46
    %s64 = sphi 0, %s64
    %s66 = sphi 0, %s64
    %s67 = sphi 0, %s66
    %s81 = sphi 0, %s67
    %s87 = sphi 0, %s89
    %s90 = sphi 0, %s87
    %s91 = sphi 0, %s90
    %s107 = sphi 0, %s91
  $region4: #{hgvae_forward.5} parent=0 // loop_header_branch
    %12 = sbr.rel (%p10) target = $region8
  $region5: #{hgvae_forward.5} parent=0 // loop_body
    %s14 = ssub.s32 %s9, 1
    %s15 = ssub.s32 %s9, 2
    %s16 = sadd.s32 %s9, 1
    %s17 = ssub.s32 %s9, %s16
    %p18 = scmp.eq.s32.totalorder %s17, 0
    %s20 = sadd.s32 %s19, 1
    %s21 = scalar_select %p18, %s19, %s20
    %p24 = pneg %p18
    %p25 = scmp.eq.s32.totalorder %s9, 1
    %p26 = por %p24, %p25
    %p27 = scmp.ne.s32.totalorder %s19, %s22
    %p28 = scmp.eq.s32.totalorder %s9, 0
    %p29 = por %p27, %p28
    %p30 = scmp.ne.s32.totalorder %s19, %s22
    %p31 = scmp.eq.s32.totalorder %s14, 1
    %p32 = por %p30, %p31
    %p33 = scmp.ne.s32.totalorder %s22, %s23
    %p34 = scmp.eq.s32.totalorder %s14, 0
    %p35 = por %p33, %p34
    %p36 = scmp.ne.s32.totalorder %s22, %s23
    %p37 = scmp.eq.s32.totalorder %s15, 1
    %p38 = por %p36, %p37
    %p40 = scmp.ne.s32.totalorder %s23, %s39
    %p41 = scmp.eq.s32.totalorder %s15, 0
    %p42 = por %p40, %p41
    %s44 = sadd.s32 %s43, 1
    %p47 = scmp.eq.s32.totalorder %s9, 1
    %p48 = scmp.ne.s32.totalorder %s43, %s45
    %p49 = scmp.eq.s32.totalorder %s9, 0
    %p50 = por %p48, %p49
    %p51 = scmp.ne.s32.totalorder %s43, %s45
    %p52 = scmp.eq.s32.totalorder %s14, 1
    %p53 = por %p51, %p52
    %p54 = scmp.ne.s32.totalorder %s45, %s46
    %p55 = scmp.eq.s32.totalorder %s14, 0
    %p56 = por %p54, %p55
    %p57 = scmp.ne.s32.totalorder %s45, %s46
    %p58 = scmp.eq.s32.totalorder %s15, 1
    %p59 = por %p57, %p58
    %p61 = scmp.ne.s32.totalorder %s46, %s60
    %p62 = scmp.eq.s32.totalorder %s15, 0
    %p63 = por %p61, %p62
    %s65 = sadd.s32 %s64, 1
    %p68 = scmp.eq.s32.totalorder %s9, 1
    %p69 = scmp.ne.s32.totalorder %s64, %s66
    %p70 = scmp.eq.s32.totalorder %s9, 0
    %p71 = por %p69, %p70
    %p72 = scmp.ne.s32.totalorder %s64, %s66
    %p73 = scmp.eq.s32.totalorder %s14, 1
    %p74 = por %p72, %p73
    %p75 = scmp.ne.s32.totalorder %s66, %s67
    %p76 = scmp.eq.s32.totalorder %s14, 0
    %p77 = por %p75, %p76
    %p78 = scmp.ne.s32.totalorder %s66, %s67
    %p79 = scmp.eq.s32.totalorder %s15, 1
    %p80 = por %p78, %p79
    %p82 = scmp.ne.s32.totalorder %s67, %s81
    %p83 = scmp.eq.s32.totalorder %s15, 0
    %p84 = por %p82, %p83
    %s85 = ssub.s32 %s9, %s16
    %p86 = scmp.eq.s32.totalorder %s85, 0
    %s88 = sadd.s32 %s87, 1
    %s89 = scalar_select %p86, %s87, %s88
    %p92 = pneg %p86
    %p93 = scmp.eq.s32.totalorder %s9, 1
    %p94 = por %p92, %p93
    %p95 = scmp.ne.s32.totalorder %s87, %s90
    %p96 = scmp.eq.s32.totalorder %s9, 0
    %p97 = por %p95, %p96
    %p98 = scmp.ne.s32.totalorder %s87, %s90
    %p99 = scmp.eq.s32.totalorder %s14, 1
    %p100 = por %p98, %p99
    %p101 = scmp.ne.s32.totalorder %s90, %s91
    %p102 = scmp.eq.s32.totalorder %s14, 0
    %p103 = por %p101, %p102
    %p104 = scmp.ne.s32.totalorder %s90, %s91
    %p105 = scmp.eq.s32.totalorder %s15, 1
    %p106 = por %p104, %p105
    %p108 = scmp.ne.s32.totalorder %s91, %s107
    %p109 = scmp.eq.s32.totalorder %s15, 0
    %p110 = por %p108, %p109
    %p111 = scmp.le.s32.totalorder 1, %s9
    %p112 = scmp.lt.s32.totalorder %s9, 3
    %p113 = pnand %p111, %p112
    %p114 = pneg %p113
    // Predicated region
    $region9: #{hgvae_forward.5} parent=5 // pred_check
      _
    $region10: #{hgvae_forward.5} parent=5 // pred_check_branch
      %116 = sbr.rel (%p113) target = $region12
    $region11: #{hgvae_forward.5} parent=5 // pred_region
      %s117 = ssub.s32 %s9, 1
      // Predicated region
      $region13: #{hgvae_forward.5} parent=11 // pred_check
        %p118 = pneg %p56
      $region14: #{hgvae_forward.5} parent=11 // pred_check_branch
        %120 = sbr.rel (%p118) target = $region16
      $region15: #{hgvae_forward.5} parent=11 // pred_region
        _
      $region16: #{hgvae_forward.5} parent=11 // pred_fallthru
        _
      // Predicated region
      $region17: #{hgvae_forward.5} parent=11 // pred_check
        %p121 = pneg %p77
      $region18: #{hgvae_forward.5} parent=11 // pred_check_branch
        %123 = sbr.rel (%p121) target = $region20
      $region19: #{hgvae_forward.5} parent=11 // pred_region
        _
      $region20: #{hgvae_forward.5} parent=11 // pred_fallthru
        _
    $region12: #{hgvae_forward.5} parent=5 // pred_fallthru
      _
    %p124 = scmp.lt.s32.totalorder %s9, 2
    // Predicated region
    $region21: #{hgvae_forward.5} parent=5 // pred_check
      %p125 = pneg %p124
    $region22: #{hgvae_forward.5} parent=5 // pred_check_branch
      %127 = sbr.rel (%p125) target = $region24
    $region23: #{hgvae_forward.5} parent=5 // pred_region
      // Predicated region
      $region25: #{hgvae_forward.5} parent=23 // pred_check
        %p128 = pneg %p29
      $region26: #{hgvae_forward.5} parent=23 // pred_check_branch
        %130 = sbr.rel (%p128) target = $region28
      $region27: #{hgvae_forward.5} parent=23 // pred_region
        %p131 = scmp.lt.s32.totalorder %s9, 1
        %s132 = scalar_select %p131, %s9, 1
        %s133 = smul.addr %s132, 8
        %s134 = scalar_lea.vmem %s0, %s133
      $region28: #{hgvae_forward.5} parent=23 // pred_fallthru
        _
    $region24: #{hgvae_forward.5} parent=5 // pred_fallthru
      _
    %p135 = scmp.le.s32.totalorder 1, %s9
    %p136 = scmp.lt.s32.totalorder %s9, 3
    %p137 = pnand %p135, %p136
    %p138 = pneg %p137
    // Predicated region
    $region29: #{hgvae_forward.5} parent=5 // pred_check
      _
    $region30: #{hgvae_forward.5} parent=5 // pred_check_branch
      %140 = sbr.rel (%p137) target = $region32
    $region31: #{hgvae_forward.5} parent=5 // pred_region
      %s141 = ssub.s32 %s9, 1
      %p142 = scmp.lt.s32.totalorder %s14, 1
      %s143 = scalar_select %p142, %s14, 1
      %s144 = smul.addr %s143, 8
      %s145 = scalar_lea.vmem %s0, %s144
      %p146 = pneg %p35
      %p147 = pneg %p32
      %p148 = pneg %p56
      %p149 = pneg %p53
      %p150 = pneg %p77
      %p151 = pneg %p74
      %p152 = pneg %p103
      %p153 = pneg %p100
      %p154 = scmp.lt.s32.totalorder %s14, 1
      %s155 = scalar_select %p154, %s14, 1
      %s156 = smul.addr %s155, 8
      %s157 = scalar_lea.vmem %s3, %s156
      %p158 = scmp.lt.s32.totalorder %s14, 1
      %s159 = scalar_select %p158, %s14, 1
      %s160 = smul.addr %s159, 8
      %s161 = scalar_lea.vmem %s0, %s160
      %p162 = scmp.lt.s32.totalorder %s14, 1
      %s163 = scalar_select %p162, %s14, 1
      %s164 = smul.addr %s163, 8
      %s165 = scalar_lea.vmem %s3, %s164
      %v166 = vld [vmem:[%s161] sm:$0xff]
      %v167 = vld [vmem:[%s1] sm:$0xff]
      %v168 = vld [vmem:[%s1 + $0x8] sm:$0xff]
      %v169 = vld [vmem:[%s1 + $0x10] sm:$0xff]
      %v170 = vld [vmem:[%s1 + $0x18] sm:$0xff]
      %v171 = vld [vmem:[%s1 + $0x20] sm:$0xff]
      %v172 = vld [vmem:[%s1 + $0x28] sm:$0xff]
      %v173 = vld [vmem:[%s1 + $0x30] sm:$0xff]
      %v174 = vld [vmem:[%s1 + $0x38] sm:$0xff]
      %v175 = vld [vmem:[%s1 + $0x40] sm:$0xff]
      %v176 = vld [vmem:[%s1 + $0x48] sm:$0xff]
      %v177 = vld [vmem:[%s1 + $0x50] sm:$0xff]
      %v178 = vld [vmem:[%s1 + $0x58] sm:$0xff]
      %v179 = vld [vmem:[%s1 + $0x60] sm:$0xff]
      %v180 = vld [vmem:[%s1 + $0x68] sm:$0xff]
      %v181 = vld [vmem:[%s1 + $0x70] sm:$0xff]
      %v182 = vld [vmem:[%s1 + $0x78] sm:$0xff]
      %v183 = vld [vmem:[%s2] sm:$0x1]
      %v185 = vlaneseq
      %v186 = vshrl.u32 %v185, 7
      %v187 = vsub.s32 0, %v186
      %v188 = vrot.slane %v183, %v187
      %190 = vmatprep.subr.mxu0 0.0
      %191 = vmatpush1.msra.mxu0 %v167
      %192 = vmatprep.subr.mxu0 0.0
      %193 = vmatpush1.msra.mxu0 %v168
      %194 = vmatprep.subr.mxu0 0.0
      %195 = vmatpush1.msra.mxu0 %v169
      %196 = vmatprep.subr.mxu0 0.0
      %197 = vmatpush1.msra.mxu0 %v170
      %198 = vmatprep.subr.mxu0 0.0
      %199 = vmatpush1.msra.mxu0 %v171
      %200 = vmatprep.subr.mxu0 0.0
      %201 = vmatpush1.msra.mxu0 %v172
      %202 = vmatprep.subr.mxu0 0.0
      %203 = vmatpush1.msra.mxu0 %v173
      %204 = vmatprep.subr.mxu0 0.0
      %205 = vmatpush1.msra.mxu0 %v174
      %206 = vmatprep.subr.mxu0 0.0
      %207 = vmatpush1.msra.mxu0 %v175
      %208 = vmatprep.subr.mxu0 0.0
      %209 = vmatpush1.msra.mxu0 %v176
      %210 = vmatprep.subr.mxu0 0.0
      %211 = vmatpush1.msra.mxu0 %v177
      %212 = vmatprep.subr.mxu0 0.0
      %213 = vmatpush1.msra.mxu0 %v178
      %214 = vmatprep.subr.mxu0 0.0
      %215 = vmatpush1.msra.mxu0 %v179
      %216 = vmatprep.subr.mxu0 0.0
      %217 = vmatpush1.msra.mxu0 %v180
      %218 = vmatprep.subr.mxu0 0.0
      %219 = vmatpush1.msra.mxu0 %v181
      %220 = vmatprep.subr.mxu0 0.0
      %221 = vmatpush1.msra.mxu0 %v182
      %222 = vmatprep.subr.mxu0 0.0
      %223 = vmatpush1.msra.mxu0 0.0
      %224 = vmatprep.subr.mxu0 0.0
      %225 = vmatpush1.msra.mxu0 0.0
      %226 = vmatprep.subr.mxu0 0.0
      %227 = vmatpush1.msra.mxu0 0.0
      %228 = vmatprep.subr.mxu0 0.0
      %229 = vmatpush1.msra.mxu0 0.0
      %230 = vmatprep.subr.mxu0 0.0
      %231 = vmatpush1.msra.mxu0 0.0
      %232 = vmatprep.subr.mxu0 0.0
      %233 = vmatpush1.msra.mxu0 0.0
      %234 = vmatprep.subr.mxu0 0.0
      %235 = vmatpush1.msra.mxu0 0.0
      %236 = vmatprep.subr.mxu0 0.0
      %237 = vmatpush1.msra.mxu0 0.0
      %238 = vmatprep.subr.mxu0 0.0
      %239 = vmatpush1.msra.mxu0 0.0
      %240 = vmatprep.subr.mxu0 0.0
      %241 = vmatpush1.msra.mxu0 0.0
      %242 = vmatprep.subr.mxu0 0.0
      %243 = vmatpush1.msra.mxu0 0.0
      %244 = vmatprep.subr.mxu0 0.0
      %245 = vmatpush1.msra.mxu0 0.0
      %246 = vmatprep.subr.mxu0 0.0
      %247 = vmatpush1.msra.mxu0 0.0
      %248 = vmatprep.subr.mxu0 0.0
      %249 = vmatpush1.msra.mxu0 0.0
      %250 = vmatprep.subr.mxu0 0.0
      %251 = vmatpush1.msra.mxu0 0.0
      %252 = vmatprep.subr.mxu0 0.0
      %253 = vmatpush1.msra.mxu0 0.0
      %254 = vmatprep.mubr.f32.mxu0 0.0
      %255 = vmatmul.mubr.f32.gmra.mrb[0].mxu0 %v166
      %v256 = vpop.f32.mrb[0].mxu0
      %v257 = vadd.f32 %v188, %v256
      %v258 = vpop.f32.mrb[0].mxu0
      %259 = vdwg.mxu0
      %260 = vst [vmem:[%s165] sm:$0xff] %v257
      %p261 = scmp.lt.s32.totalorder %s14, 1
      %s262 = scalar_select %p261, %s14, 1
      %s263 = smul.addr %s262, 8
      %s264 = scalar_lea.vmem %s3, %s263
      // Predicated region
      $region33: #{hgvae_forward.5} parent=31 // pred_check
        %p265 = pneg %p100
      $region34: #{hgvae_forward.5} parent=31 // pred_check_branch
        %267 = sbr.rel (%p265) target = $region36
      $region35: #{hgvae_forward.5} parent=31 // pred_region
        _
      $region36: #{hgvae_forward.5} parent=31 // pred_fallthru
        _
    $region32: #{hgvae_forward.5} parent=5 // pred_fallthru
      _
    %p268 = scmp.le.s32.totalorder 2, %s9
    // Predicated region
    $region37: #{hgvae_forward.5} parent=5 // pred_check
      %p269 = pneg %p268
    $region38: #{hgvae_forward.5} parent=5 // pred_check_branch
      %271 = sbr.rel (%p269) target = $region40
    $region39: #{hgvae_forward.5} parent=5 // pred_region
      %s272 = ssub.s32 %s9, 2
      // Predicated region
      $region41: #{hgvae_forward.5} parent=39 // pred_check
        %p273 = pneg %p106
      $region42: #{hgvae_forward.5} parent=39 // pred_check_branch
        %275 = sbr.rel (%p273) target = $region44
      $region43: #{hgvae_forward.5} parent=39 // pred_region
        %p276 = scmp.lt.s32.totalorder %s15, 1
        %s277 = scalar_select %p276, %s15, 1
        %s278 = smul.addr %s277, 8
        %s279 = scalar_lea.vmem %s3, %s278
      $region44: #{hgvae_forward.5} parent=39 // pred_fallthru
        _
    $region40: #{hgvae_forward.5} parent=5 // pred_fallthru
      _
  $region6: #{hgvae_forward.5} parent=0 // loop_footer
    %s13 = sadd.s32 1, %s9
  $region7: #{hgvae_forward.5} parent=0 // loop_footer_branch
    %8 = sbr.rel target = $region3
  $region8: #{hgvae_forward.5} parent=0 // loop_exit
    _

// kernel: hgvae_forward.8
$region0: #{hgvae_forward.8}
  #allocation0 [shape = 'u32[]', space=smem, size = 0x4, offset = 0x4, fixed_abs, tag = 'smem constant byte address 0x4 - core index']
  #allocation1 [shape = 'u32[144,128]{1,0:T(1,128)}', space=vmem, size = 0x12000, scoped, tag = 'internal scratch']
  %s0 = inlined_call_operand.vmem [shape: f32[128,16], index: 0, kind: input, shape index: {}]
  %s1 = inlined_call_operand.vmem [shape: f32[16,128], index: 1, kind: input, shape index: {}]
  %s2 = inlined_call_operand.vmem [shape: f32[128,128], index: 2, kind: input, shape index: {}]
  %s3 = inlined_call_operand.vmem [shape: f32[1,128], index: 3, kind: input, shape index: {}]
  %s4 = inlined_call_operand.vmem [shape: f32[128,1], index: 4, kind: input, shape index: {}]
  %s5 = inlined_call_operand.vmem [shape: f32[128,128], index: 5, kind: output, shape index: {0}]
  %s6 = inlined_call_operand.vmem [shape: f32[128,1], index: 6, kind: output, shape index: {1}]
  %7 = xla_tuple %s5, %s6
  %s8 = sld [smem:[#allocation0]]
  $region38: #{hgvae_forward.8} parent=0
    _
  %s10 = ssub.s32 1, %s8
  %s11 = scalar_select 0, %s10, %s8
  // Predicated region
  $region2: #{hgvae_forward.8} parent=0 // pred_check
    _
  $region3: #{hgvae_forward.8} parent=0 // pred_check_branch
    %13 = sbr.rel (0) target = $region5
  $region4: #{hgvae_forward.8} parent=0 // pred_region
    _
  $region5: #{hgvae_forward.8} parent=0 // pred_fallthru
    _
  // Predicated region
  $region6: #{hgvae_forward.8} parent=0 // pred_check
    _
  $region7: #{hgvae_forward.8} parent=0 // pred_check_branch
    %15 = sbr.rel (0) target = $region9
  $region8: #{hgvae_forward.8} parent=0 // pred_region
    _
  $region9: #{hgvae_forward.8} parent=0 // pred_fallthru
    _
  // Predicated region
  $region10: #{hgvae_forward.8} parent=0 // pred_check
    _
  $region11: #{hgvae_forward.8} parent=0 // pred_check_branch
    %17 = sbr.rel (0) target = $region13
  $region12: #{hgvae_forward.8} parent=0 // pred_region
    _
  $region13: #{hgvae_forward.8} parent=0 // pred_fallthru
    _
  // Predicated region
  $region14: #{hgvae_forward.8} parent=0 // pred_check
    _
  $region15: #{hgvae_forward.8} parent=0 // pred_check_branch
    %19 = sbr.rel (0) target = $region17
  $region16: #{hgvae_forward.8} parent=0 // pred_region
    _
  $region17: #{hgvae_forward.8} parent=0 // pred_fallthru
    _
  // Predicated region
  $region18: #{hgvae_forward.8} parent=0 // pred_check
    _
  $region19: #{hgvae_forward.8} parent=0 // pred_check_branch
    %21 = sbr.rel (0) target = $region21
  $region20: #{hgvae_forward.8} parent=0 // pred_region
    _
  $region21: #{hgvae_forward.8} parent=0 // pred_fallthru
    _
  %v22 = vld [vmem:[%s0] sm:$0xff]
  %v23 = vld [vmem:[%s0 + $0x8] sm:$0xff]
  %v24 = vld [vmem:[%s0 + $0x10] sm:$0xff]
  %v25 = vld [vmem:[%s0 + $0x18] sm:$0xff]
  %v26 = vld [vmem:[%s0 + $0x20] sm:$0xff]
  %v27 = vld [vmem:[%s0 + $0x28] sm:$0xff]
  %v28 = vld [vmem:[%s0 + $0x30] sm:$0xff]
  %v29 = vld [vmem:[%s0 + $0x38] sm:$0xff]
  %v30 = vld [vmem:[%s0 + $0x40] sm:$0xff]
  %v31 = vld [vmem:[%s0 + $0x48] sm:$0xff]
  %v32 = vld [vmem:[%s0 + $0x50] sm:$0xff]
  %v33 = vld [vmem:[%s0 + $0x58] sm:$0xff]
  %v34 = vld [vmem:[%s0 + $0x60] sm:$0xff]
  %v35 = vld [vmem:[%s0 + $0x68] sm:$0xff]
  %v36 = vld [vmem:[%s0 + $0x70] sm:$0xff]
  %v37 = vld [vmem:[%s0 + $0x78] sm:$0xff]
  %v38 = vld [vmem:[%s1] sm:$0xff]
  %v39 = vld [vmem:[%s1 + $0x8] sm:$0xff]
  %vm40 = vcmask 130048
  %v42 = vsel %vm40, %v22, 0
  %v45 = vsel %vm40, %v23, 0
  %v48 = vsel %vm40, %v24, 0
  %v51 = vsel %vm40, %v25, 0
  %v54 = vsel %vm40, %v26, 0
  %v57 = vsel %vm40, %v27, 0
  %v60 = vsel %vm40, %v28, 0
  %v63 = vsel %vm40, %v29, 0
  %v66 = vsel %vm40, %v30, 0
  %v69 = vsel %vm40, %v31, 0
  %v72 = vsel %vm40, %v32, 0
  %v75 = vsel %vm40, %v33, 0
  %v78 = vsel %vm40, %v34, 0
  %v81 = vsel %vm40, %v35, 0
  %v84 = vsel %vm40, %v36, 0
  %v87 = vsel %vm40, %v37, 0
  %89 = vmatprep.subr.mxu0 0.0
  %90 = vmatpush1.msra.mxu0 %v38
  %91 = vmatprep.subr.mxu0 0.0
  %92 = vmatpush1.msra.mxu0 %v39
  %93 = vmatprep.subr.mxu0 0.0
  %94 = vmatpush1.msra.mxu0 0.0
  %95 = vmatprep.subr.mxu0 0.0
  %96 = vmatpush1.msra.mxu0 0.0
  %97 = vmatprep.subr.mxu0 0.0
  %98 = vmatpush1.msra.mxu0 0.0
  %99 = vmatprep.subr.mxu0 0.0
  %100 = vmatpush1.msra.mxu0 0.0
  %101 = vmatprep.subr.mxu0 0.0
  %102 = vmatpush1.msra.mxu0 0.0
  %103 = vmatprep.subr.mxu0 0.0
  %104 = vmatpush1.msra.mxu0 0.0
  %105 = vmatprep.subr.mxu0 0.0
  %106 = vmatpush1.msra.mxu0 0.0
  %107 = vmatprep.subr.mxu0 0.0
  %108 = vmatpush1.msra.mxu0 0.0
  %109 = vmatprep.subr.mxu0 0.0
  %110 = vmatpush1.msra.mxu0 0.0
  %111 = vmatprep.subr.mxu0 0.0
  %112 = vmatpush1.msra.mxu0 0.0
  %113 = vmatprep.subr.mxu0 0.0
  %114 = vmatpush1.msra.mxu0 0.0
  %115 = vmatprep.subr.mxu0 0.0
  %116 = vmatpush1.msra.mxu0 0.0
  %117 = vmatprep.subr.mxu0 0.0
  %118 = vmatpush1.msra.mxu0 0.0
  %119 = vmatprep.subr.mxu0 0.0
  %120 = vmatpush1.msra.mxu0 0.0
  %121 = vmatprep.subr.mxu0 0.0
  %122 = vmatpush1.msra.mxu0 0.0
  %123 = vmatprep.subr.mxu0 0.0
  %124 = vmatpush1.msra.mxu0 0.0
  %125 = vmatprep.subr.mxu0 0.0
  %126 = vmatpush1.msra.mxu0 0.0
  %127 = vmatprep.subr.mxu0 0.0
  %128 = vmatpush1.msra.mxu0 0.0
  %129 = vmatprep.subr.mxu0 0.0
  %130 = vmatpush1.msra.mxu0 0.0
  %131 = vmatprep.subr.mxu0 0.0
  %132 = vmatpush1.msra.mxu0 0.0
  %133 = vmatprep.subr.mxu0 0.0
  %134 = vmatpush1.msra.mxu0 0.0
  %135 = vmatprep.subr.mxu0 0.0
  %136 = vmatpush1.msra.mxu0 0.0
  %137 = vmatprep.subr.mxu0 0.0
  %138 = vmatpush1.msra.mxu0 0.0
  %139 = vmatprep.subr.mxu0 0.0
  %140 = vmatpush1.msra.mxu0 0.0
  %141 = vmatprep.subr.mxu0 0.0
  %142 = vmatpush1.msra.mxu0 0.0
  %143 = vmatprep.subr.mxu0 0.0
  %144 = vmatpush1.msra.mxu0 0.0
  %145 = vmatprep.subr.mxu0 0.0
  %146 = vmatpush1.msra.mxu0 0.0
  %147 = vmatprep.subr.mxu0 0.0
  %148 = vmatpush1.msra.mxu0 0.0
  %149 = vmatprep.subr.mxu0 0.0
  %150 = vmatpush1.msra.mxu0 0.0
  %151 = vmatprep.subr.mxu0 0.0
  %152 = vmatpush1.msra.mxu0 0.0
  %153 = vmatprep.mubr.f32.mxu0 0.0
  %154 = vmatmul.mubr.f32.gmra.mrb[0].mxu0 %v42
  %v155 = vpop.f32.mrb[0].mxu0
  %v156 = vadd.f32 0.0, %v155
  %v157 = vpop.f32.mrb[0].mxu0
  %158 = vmatprep.mubr.f32.mxu0 0.0
  %159 = vmatmul.mubr.f32.gmra.mrb[0].mxu0 %v45
  %v160 = vpop.f32.mrb[0].mxu0
  %v161 = vadd.f32 0.0, %v160
  %v162 = vpop.f32.mrb[0].mxu0
  %163 = vmatprep.mubr.f32.mxu0 0.0
  %164 = vmatmul.mubr.f32.gmra.mrb[0].mxu0 %v48
  %v165 = vpop.f32.mrb[0].mxu0
  %v166 = vadd.f32 0.0, %v165
  %v167 = vpop.f32.mrb[0].mxu0
  %168 = vmatprep.mubr.f32.mxu0 0.0
  %169 = vmatmul.mubr.f32.gmra.mrb[0].mxu0 %v51
  %v170 = vpop.f32.mrb[0].mxu0
  %v171 = vadd.f32 0.0, %v170
  %v172 = vpop.f32.mrb[0].mxu0
  %173 = vmatprep.mubr.f32.mxu0 0.0
  %174 = vmatmul.mubr.f32.gmra.mrb[0].mxu0 %v54
  %v175 = vpop.f32.mrb[0].mxu0
  %v176 = vadd.f32 0.0, %v175
  %v177 = vpop.f32.mrb[0].mxu0
  %178 = vmatprep.mubr.f32.mxu0 0.0
  %179 = vmatmul.mubr.f32.gmra.mrb[0].mxu0 %v57
  %v180 = vpop.f32.mrb[0].mxu0
  %v181 = vadd.f32 0.0, %v180
  %v182 = vpop.f32.mrb[0].mxu0
  %183 = vmatprep.mubr.f32.mxu0 0.0
  %184 = vmatmul.mubr.f32.gmra.mrb[0].mxu0 %v60
  %v185 = vpop.f32.mrb[0].mxu0
  %v186 = vadd.f32 0.0, %v185
  %v187 = vpop.f32.mrb[0].mxu0
  %188 = vmatprep.mubr.f32.mxu0 0.0
  %189 = vmatmul.mubr.f32.gmra.mrb[0].mxu0 %v63
  %v190 = vpop.f32.mrb[0].mxu0
  %v191 = vadd.f32 0.0, %v190
  %v192 = vpop.f32.mrb[0].mxu0
  %193 = vmatprep.mubr.f32.mxu0 0.0
  %194 = vmatmul.mubr.f32.gmra.mrb[0].mxu0 %v66
  %v195 = vpop.f32.mrb[0].mxu0
  %v196 = vadd.f32 0.0, %v195
  %v197 = vpop.f32.mrb[0].mxu0
  %198 = vmatprep.mubr.f32.mxu0 0.0
  %199 = vmatmul.mubr.f32.gmra.mrb[0].mxu0 %v69
  %v200 = vpop.f32.mrb[0].mxu0
  %v201 = vadd.f32 0.0, %v200
  %v202 = vpop.f32.mrb[0].mxu0
  %203 = vmatprep.mubr.f32.mxu0 0.0
  %204 = vmatmul.mubr.f32.gmra.mrb[0].mxu0 %v72
  %v205 = vpop.f32.mrb[0].mxu0
  %v206 = vadd.f32 0.0, %v205
  %v207 = vpop.f32.mrb[0].mxu0
  %208 = vmatprep.mubr.f32.mxu0 0.0
  %209 = vmatmul.mubr.f32.gmra.mrb[0].mxu0 %v75
  %v210 = vpop.f32.mrb[0].mxu0
  %v211 = vadd.f32 0.0, %v210
  %v212 = vpop.f32.mrb[0].mxu0
  %213 = vmatprep.mubr.f32.mxu0 0.0
  %214 = vmatmul.mubr.f32.gmra.mrb[0].mxu0 %v78
  %v215 = vpop.f32.mrb[0].mxu0
  %v216 = vadd.f32 0.0, %v215
  %v217 = vpop.f32.mrb[0].mxu0
  %218 = vmatprep.mubr.f32.mxu0 0.0
  %219 = vmatmul.mubr.f32.gmra.mrb[0].mxu0 %v81
  %v220 = vpop.f32.mrb[0].mxu0
  %v221 = vadd.f32 0.0, %v220
  %v222 = vpop.f32.mrb[0].mxu0
  %223 = vmatprep.mubr.f32.mxu0 0.0
  %224 = vmatmul.mubr.f32.gmra.mrb[0].mxu0 %v84
  %v225 = vpop.f32.mrb[0].mxu0
  %v226 = vadd.f32 0.0, %v225
  %v227 = vpop.f32.mrb[0].mxu0
  %228 = vmatprep.mubr.f32.mxu0 0.0
  %229 = vmatmul.mubr.f32.gmra.mrb[0].mxu0 %v87
  %v230 = vpop.f32.mrb[0].mxu0
  %v231 = vadd.f32 0.0, %v230
  %v232 = vpop.f32.mrb[0].mxu0
  %233 = vdwg.mxu0
  %234 = vst [vmem:[%s5] sm:$0xff] %v156
  %235 = vst [vmem:[%s5 + $0x8] sm:$0xff] %v161
  %236 = vst [vmem:[%s5 + $0x10] sm:$0xff] %v166
  %237 = vst [vmem:[%s5 + $0x18] sm:$0xff] %v171
  %238 = vst [vmem:[%s5 + $0x20] sm:$0xff] %v176
  %239 = vst [vmem:[%s5 + $0x28] sm:$0xff] %v181
  %240 = vst [vmem:[%s5 + $0x30] sm:$0xff] %v186
  %241 = vst [vmem:[%s5 + $0x38] sm:$0xff] %v191
  %242 = vst [vmem:[%s5 + $0x40] sm:$0xff] %v196
  %243 = vst [vmem:[%s5 + $0x48] sm:$0xff] %v201
  %244 = vst [vmem:[%s5 + $0x50] sm:$0xff] %v206
  %245 = vst [vmem:[%s5 + $0x58] sm:$0xff] %v211
  %246 = vst [vmem:[%s5 + $0x60] sm:$0xff] %v216
  %247 = vst [vmem:[%s5 + $0x68] sm:$0xff] %v221
  %248 = vst [vmem:[%s5 + $0x70] sm:$0xff] %v226
  %249 = vst [vmem:[%s5 + $0x78] sm:$0xff] %v231
  %v250 = vld [vmem:[%s2] sm:$0xff]
  %v251 = vld [vmem:[%s2 + $0x8] sm:$0xff]
  %v252 = vld [vmem:[%s2 + $0x10] sm:$0xff]
  %v253 = vld [vmem:[%s2 + $0x18] sm:$0xff]
  %v254 = vld [vmem:[%s2 + $0x20] sm:$0xff]
  %v255 = vld [vmem:[%s2 + $0x28] sm:$0xff]
  %v256 = vld [vmem:[%s2 + $0x30] sm:$0xff]
  %v257 = vld [vmem:[%s2 + $0x38] sm:$0xff]
  %v258 = vld [vmem:[%s2 + $0x40] sm:$0xff]
  %v259 = vld [vmem:[%s2 + $0x48] sm:$0xff]
  %v260 = vld [vmem:[%s2 + $0x50] sm:$0xff]
  %v261 = vld [vmem:[%s2 + $0x58] sm:$0xff]
  %v262 = vld [vmem:[%s2 + $0x60] sm:$0xff]
  %v263 = vld [vmem:[%s2 + $0x68] sm:$0xff]
  %v264 = vld [vmem:[%s2 + $0x70] sm:$0xff]
  %v265 = vld [vmem:[%s2 + $0x78] sm:$0xff]
  %v266 = vld [vmem:[%s3] sm:$0x1]
  %v268 = vlaneseq
  %v269 = vshrl.u32 %v268, 7
  %v270 = vsub.s32 0, %v269
  %v271 = vrot.slane %v266, %v270
  %273 = vmatprep.subr.mxu0 0.0
  %274 = vmatpush1.msra.mxu0 %v250
  %275 = vmatprep.subr.mxu0 0.0
  %276 = vmatpush1.msra.mxu0 %v251
  %277 = vmatprep.subr.mxu0 0.0
  %278 = vmatpush1.msra.mxu0 %v252
  %279 = vmatprep.subr.mxu0 0.0
  %280 = vmatpush1.msra.mxu0 %v253
  %281 = vmatprep.subr.mxu0 0.0
  %282 = vmatpush1.msra.mxu0 %v254
  %283 = vmatprep.subr.mxu0 0.0
  %284 = vmatpush1.msra.mxu0 %v255
  %285 = vmatprep.subr.mxu0 0.0
  %286 = vmatpush1.msra.mxu0 %v256
  %287 = vmatprep.subr.mxu0 0.0
  %288 = vmatpush1.msra.mxu0 %v257
  %289 = vmatprep.subr.mxu0 0.0
  %290 = vmatpush1.msra.mxu0 %v258
  %291 = vmatprep.subr.mxu0 0.0
  %292 = vmatpush1.msra.mxu0 %v259
  %293 = vmatprep.subr.mxu0 0.0
  %294 = vmatpush1.msra.mxu0 %v260
  %295 = vmatprep.subr.mxu0 0.0
  %296 = vmatpush1.msra.mxu0 %v261
  %297 = vmatprep.subr.mxu0 0.0
  %298 = vmatpush1.msra.mxu0 %v262
  %299 = vmatprep.subr.mxu0 0.0
  %300 = vmatpush1.msra.mxu0 %v263
  %301 = vmatprep.subr.mxu0 0.0
  %302 = vmatpush1.msra.mxu0 %v264
  %303 = vmatprep.subr.mxu0 0.0
  %304 = vmatpush1.msra.mxu0 %v265
  %305 = vmatprep.subr.mxu0 0.0
  %306 = vmatpush1.msra.mxu0 0.0
  %307 = vmatprep.subr.mxu0 0.0
  %308 = vmatpush1.msra.mxu0 0.0
  %309 = vmatprep.subr.mxu0 0.0
  %310 = vmatpush1.msra.mxu0 0.0
  %311 = vmatprep.subr.mxu0 0.0
  %312 = vmatpush1.msra.mxu0 0.0
  %313 = vmatprep.subr.mxu0 0.0
  %314 = vmatpush1.msra.mxu0 0.0
  %315 = vmatprep.subr.mxu0 0.0
  %316 = vmatpush1.msra.mxu0 0.0
  %317 = vmatprep.subr.mxu0 0.0
  %318 = vmatpush1.msra.mxu0 0.0
  %319 = vmatprep.subr.mxu0 0.0
  %320 = vmatpush1.msra.mxu0 0.0
  %321 = vmatprep.subr.mxu0 0.0
  %322 = vmatpush1.msra.mxu0 0.0
  %323 = vmatprep.subr.mxu0 0.0
  %324 = vmatpush1.msra.mxu0 0.0
  %325 = vmatprep.subr.mxu0 0.0
  %326 = vmatpush1.msra.mxu0 0.0
  %327 = vmatprep.subr.mxu0 0.0
  %328 = vmatpush1.msra.mxu0 0.0
  %329 = vmatprep.subr.mxu0 0.0
  %330 = vmatpush1.msra.mxu0 0.0
  %331 = vmatprep.subr.mxu0 0.0
  %332 = vmatpush1.msra.mxu0 0.0
  %333 = vmatprep.subr.mxu0 0.0
  %334 = vmatpush1.msra.mxu0 0.0
  %335 = vmatprep.subr.mxu0 0.0
  %336 = vmatpush1.msra.mxu0 0.0
  %337 = vmatprep.mubr.f32.mxu0 0.0
  %338 = vmatmul.mubr.f32.gmra.mrb[0].mxu0 %v156
  %v339 = vpop.f32.mrb[0].mxu0
  %v340 = vadd.f32 %v271, %v339
  %v341 = vpop.f32.mrb[0].mxu0
  %342 = vmatprep.mubr.f32.mxu0 0.0
  %343 = vmatmul.mubr.f32.gmra.mrb[0].mxu0 %v161
  %v344 = vpop.f32.mrb[0].mxu0
  %v345 = vadd.f32 %v271, %v344
  %v346 = vpop.f32.mrb[0].mxu0
  %347 = vmatprep.mubr.f32.mxu0 0.0
  %348 = vmatmul.mubr.f32.gmra.mrb[0].mxu0 %v166
  %v349 = vpop.f32.mrb[0].mxu0
  %v350 = vadd.f32 %v271, %v349
  %v351 = vpop.f32.mrb[0].mxu0
  %352 = vmatprep.mubr.f32.mxu0 0.0
  %353 = vmatmul.mubr.f32.gmra.mrb[0].mxu0 %v171
  %v354 = vpop.f32.mrb[0].mxu0
  %v355 = vadd.f32 %v271, %v354
  %v356 = vpop.f32.mrb[0].mxu0
  %357 = vmatprep.mubr.f32.mxu0 0.0
  %358 = vmatmul.mubr.f32.gmra.mrb[0].mxu0 %v176
  %v359 = vpop.f32.mrb[0].mxu0
  %v360 = vadd.f32 %v271, %v359
  %v361 = vpop.f32.mrb[0].mxu0
  %362 = vmatprep.mubr.f32.mxu0 0.0
  %363 = vmatmul.mubr.f32.gmra.mrb[0].mxu0 %v181
  %v364 = vpop.f32.mrb[0].mxu0
  %v365 = vadd.f32 %v271, %v364
  %v366 = vpop.f32.mrb[0].mxu0
  %367 = vmatprep.mubr.f32.mxu0 0.0
  %368 = vmatmul.mubr.f32.gmra.mrb[0].mxu0 %v186
  %v369 = vpop.f32.mrb[0].mxu0
  %v370 = vadd.f32 %v271, %v369
  %v371 = vpop.f32.mrb[0].mxu0
  %372 = vmatprep.mubr.f32.mxu0 0.0
  %373 = vmatmul.mubr.f32.gmra.mrb[0].mxu0 %v191
  %v374 = vpop.f32.mrb[0].mxu0
  %v375 = vadd.f32 %v271, %v374
  %v376 = vpop.f32.mrb[0].mxu0
  %377 = vmatprep.mubr.f32.mxu0 0.0
  %378 = vmatmul.mubr.f32.gmra.mrb[0].mxu0 %v196
  %v379 = vpop.f32.mrb[0].mxu0
  %v380 = vadd.f32 %v271, %v379
  %v381 = vpop.f32.mrb[0].mxu0
  %382 = vmatprep.mubr.f32.mxu0 0.0
  %383 = vmatmul.mubr.f32.gmra.mrb[0].mxu0 %v201
  %v384 = vpop.f32.mrb[0].mxu0
  %v385 = vadd.f32 %v271, %v384
  %v386 = vpop.f32.mrb[0].mxu0
  %387 = vmatprep.mubr.f32.mxu0 0.0
  %388 = vmatmul.mubr.f32.gmra.mrb[0].mxu0 %v206
  %v389 = vpop.f32.mrb[0].mxu0
  %v390 = vadd.f32 %v271, %v389
  %v391 = vpop.f32.mrb[0].mxu0
  %392 = vmatprep.mubr.f32.mxu0 0.0
  %393 = vmatmul.mubr.f32.gmra.mrb[0].mxu0 %v211
  %v394 = vpop.f32.mrb[0].mxu0
  %v395 = vadd.f32 %v271, %v394
  %v396 = vpop.f32.mrb[0].mxu0
  %397 = vmatprep.mubr.f32.mxu0 0.0
  %398 = vmatmul.mubr.f32.gmra.mrb[0].mxu0 %v216
  %v399 = vpop.f32.mrb[0].mxu0
  %v400 = vadd.f32 %v271, %v399
  %v401 = vpop.f32.mrb[0].mxu0
  %402 = vmatprep.mubr.f32.mxu0 0.0
  %403 = vmatmul.mubr.f32.gmra.mrb[0].mxu0 %v221
  %v404 = vpop.f32.mrb[0].mxu0
  %v405 = vadd.f32 %v271, %v404
  %v406 = vpop.f32.mrb[0].mxu0
  %407 = vmatprep.mubr.f32.mxu0 0.0
  %408 = vmatmul.mubr.f32.gmra.mrb[0].mxu0 %v226
  %v409 = vpop.f32.mrb[0].mxu0
  %v410 = vadd.f32 %v271, %v409
  %v411 = vpop.f32.mrb[0].mxu0
  %412 = vmatprep.mubr.f32.mxu0 0.0
  %413 = vmatmul.mubr.f32.gmra.mrb[0].mxu0 %v231
  %v414 = vpop.f32.mrb[0].mxu0
  %v415 = vadd.f32 %v271, %v414
  %v416 = vpop.f32.mrb[0].mxu0
  %417 = vdwg.mxu0
  %v418 = vtanh.pop %v340
  %v419 = vtanh.pop %v345
  %v420 = vtanh.pop %v350
  %v421 = vtanh.pop %v355
  %v422 = vtanh.pop %v360
  %v423 = vtanh.pop %v365
  %v424 = vtanh.pop %v370
  %v425 = vtanh.pop %v375
  %v426 = vtanh.pop %v380
  %v427 = vtanh.pop %v385
  %v428 = vtanh.pop %v390
  %v429 = vtanh.pop %v395
  %v430 = vtanh.pop %v400
  %v431 = vtanh.pop %v405
  %v432 = vtanh.pop %v410
  %v433 = vtanh.pop %v415
  %v434 = vld [vmem:[%s4] sm:$0xff]
  %v435 = vld [vmem:[%s4 + $0x8] sm:$0xff]
  %v436 = vld [vmem:[%s4 + $0x10] sm:$0xff]
  %v437 = vld [vmem:[%s4 + $0x18] sm:$0xff]
  %v438 = vld [vmem:[%s4 + $0x20] sm:$0xff]
  %v439 = vld [vmem:[%s4 + $0x28] sm:$0xff]
  %v440 = vld [vmem:[%s4 + $0x30] sm:$0xff]
  %v441 = vld [vmem:[%s4 + $0x38] sm:$0xff]
  %v442 = vld [vmem:[%s4 + $0x40] sm:$0xff]
  %v443 = vld [vmem:[%s4 + $0x48] sm:$0xff]
  %v444 = vld [vmem:[%s4 + $0x50] sm:$0xff]
  %v445 = vld [vmem:[%s4 + $0x58] sm:$0xff]
  %v446 = vld [vmem:[%s4 + $0x60] sm:$0xff]
  %v447 = vld [vmem:[%s4 + $0x68] sm:$0xff]
  %v448 = vld [vmem:[%s4 + $0x70] sm:$0xff]
  %v449 = vld [vmem:[%s4 + $0x78] sm:$0xff]
  %450 = vmatprep.subr.mxu0 0.0
  %451 = vmatpush1.msra.mxu0 %v434
  %452 = vmatprep.subr.mxu0 0.0
  %453 = vmatpush1.msra.mxu0 %v435
  %454 = vmatprep.subr.mxu0 0.0
  %455 = vmatpush1.msra.mxu0 %v436
  %456 = vmatprep.subr.mxu0 0.0
  %457 = vmatpush1.msra.mxu0 %v437
  %458 = vmatprep.subr.mxu0 0.0
  %459 = vmatpush1.msra.mxu0 %v438
  %460 = vmatprep.subr.mxu0 0.0
  %461 = vmatpush1.msra.mxu0 %v439
  %462 = vmatprep.subr.mxu0 0.0
  %463 = vmatpush1.msra.mxu0 %v440
  %464 = vmatprep.subr.mxu0 0.0
  %465 = vmatpush1.msra.mxu0 %v441
  %466 = vmatprep.subr.mxu0 0.0
  %467 = vmatpush1.msra.mxu0 %v442
  %468 = vmatprep.subr.mxu0 0.0
  %469 = vmatpush1.msra.mxu0 %v443
  %470 = vmatprep.subr.mxu0 0.0
  %471 = vmatpush1.msra.mxu0 %v444
  %472 = vmatprep.subr.mxu0 0.0
  %473 = vmatpush1.msra.mxu0 %v445
  %474 = vmatprep.subr.mxu0 0.0
  %475 = vmatpush1.msra.mxu0 %v446
  %476 = vmatprep.subr.mxu0 0.0
  %477 = vmatpush1.msra.mxu0 %v447
  %478 = vmatprep.subr.mxu0 0.0
  %479 = vmatpush1.msra.mxu0 %v448
  %480 = vmatprep.subr.mxu0 0.0
  %481 = vmatpush1.msra.mxu0 %v449
  %482 = vmatprep.subr.mxu0 0.0
  %483 = vmatpush1.msra.mxu0 0.0
  %484 = vmatprep.subr.mxu0 0.0
  %485 = vmatpush1.msra.mxu0 0.0
  %486 = vmatprep.subr.mxu0 0.0
  %487 = vmatpush1.msra.mxu0 0.0
  %488 = vmatprep.subr.mxu0 0.0
  %489 = vmatpush1.msra.mxu0 0.0
  %490 = vmatprep.subr.mxu0 0.0
  %491 = vmatpush1.msra.mxu0 0.0
  %492 = vmatprep.subr.mxu0 0.0
  %493 = vmatpush1.msra.mxu0 0.0
  %494 = vmatprep.subr.mxu0 0.0
  %495 = vmatpush1.msra.mxu0 0.0
  %496 = vmatprep.subr.mxu0 0.0
  %497 = vmatpush1.msra.mxu0 0.0
  %498 = vmatprep.subr.mxu0 0.0
  %499 = vmatpush1.msra.mxu0 0.0
  %500 = vmatprep.subr.mxu0 0.0
  %501 = vmatpush1.msra.mxu0 0.0
  %502 = vmatprep.subr.mxu0 0.0
  %503 = vmatpush1.msra.mxu0 0.0
  %504 = vmatprep.subr.mxu0 0.0
  %505 = vmatpush1.msra.mxu0 0.0
  %506 = vmatprep.subr.mxu0 0.0
  %507 = vmatpush1.msra.mxu0 0.0
  %508 = vmatprep.subr.mxu0 0.0
  %509 = vmatpush1.msra.mxu0 0.0
  %510 = vmatprep.subr.mxu0 0.0
  %511 = vmatpush1.msra.mxu0 0.0
  %512 = vmatprep.subr.mxu0 0.0
  %513 = vmatpush1.msra.mxu0 0.0
  %514 = vmatprep.mubr.f32.mxu0 0.0
  %515 = vmatmul.mubr.f32.gmra.mrb[0].mxu0 %v418
  %v516 = vpop.f32.mrb[0].mxu0
  %v517 = vadd.f32 0.0, %v516
  %v518 = vpop.f32.mrb[0].mxu0
  %519 = vmatprep.mubr.f32.mxu0 0.0
  %520 = vmatmul.mubr.f32.gmra.mrb[0].mxu0 %v419
  %v521 = vpop.f32.mrb[0].mxu0
  %v522 = vadd.f32 0.0, %v521
  %v523 = vpop.f32.mrb[0].mxu0
  %524 = vmatprep.mubr.f32.mxu0 0.0
  %525 = vmatmul.mubr.f32.gmra.mrb[0].mxu0 %v420
  %v526 = vpop.f32.mrb[0].mxu0
  %v527 = vadd.f32 0.0, %v526
  %v528 = vpop.f32.mrb[0].mxu0
  %529 = vmatprep.mubr.f32.mxu0 0.0
  %530 = vmatmul.mubr.f32.gmra.mrb[0].mxu0 %v421
  %v531 = vpop.f32.mrb[0].mxu0
  %v532 = vadd.f32 0.0, %v531
  %v533 = vpop.f32.mrb[0].mxu0
  %534 = vmatprep.mubr.f32.mxu0 0.0
  %535 = vmatmul.mubr.f32.gmra.mrb[0].mxu0 %v422
  %v536 = vpop.f32.mrb[0].mxu0
  %v537 = vadd.f32 0.0, %v536
  %v538 = vpop.f32.mrb[0].mxu0
  %539 = vmatprep.mubr.f32.mxu0 0.0
  %540 = vmatmul.mubr.f32.gmra.mrb[0].mxu0 %v423
  %v541 = vpop.f32.mrb[0].mxu0
  %v542 = vadd.f32 0.0, %v541
  %v543 = vpop.f32.mrb[0].mxu0
  %544 = vmatprep.mubr.f32.mxu0 0.0
  %545 = vmatmul.mubr.f32.gmra.mrb[0].mxu0 %v424
  %v546 = vpop.f32.mrb[0].mxu0
  %v547 = vadd.f32 0.0, %v546
  %v548 = vpop.f32.mrb[0].mxu0
  %549 = vmatprep.mubr.f32.mxu0 0.0
  %550 = vmatmul.mubr.f32.gmra.mrb[0].mxu0 %v425
  %v551 = vpop.f32.mrb[0].mxu0
  %v552 = vadd.f32 0.0, %v551
  %v553 = vpop.f32.mrb[0].mxu0
  %554 = vmatprep.mubr.f32.mxu0 0.0
  %555 = vmatmul.mubr.f32.gmra.mrb[0].mxu0 %v426
  %v556 = vpop.f32.mrb[0].mxu0
  %v557 = vadd.f32 0.0, %v556
  %v558 = vpop.f32.mrb[0].mxu0
  %559 = vmatprep.mubr.f32.mxu0 0.0
  %560 = vmatmul.mubr.f32.gmra.mrb[0].mxu0 %v427
  %v561 = vpop.f32.mrb[0].mxu0
  %v562 = vadd.f32 0.0, %v561
  %v563 = vpop.f32.mrb[0].mxu0
  %564 = vmatprep.mubr.f32.mxu0 0.0
  %565 = vmatmul.mubr.f32.gmra.mrb[0].mxu0 %v428
  %v566 = vpop.f32.mrb[0].mxu0
  %v567 = vadd.f32 0.0, %v566
  %v568 = vpop.f32.mrb[0].mxu0
  %569 = vmatprep.mubr.f32.mxu0 0.0
  %570 = vmatmul.mubr.f32.gmra.mrb[0].mxu0 %v429
  %v571 = vpop.f32.mrb[0].mxu0
  %v572 = vadd.f32 0.0, %v571
  %v573 = vpop.f32.mrb[0].mxu0
  %574 = vmatprep.mubr.f32.mxu0 0.0
  %575 = vmatmul.mubr.f32.gmra.mrb[0].mxu0 %v430
  %v576 = vpop.f32.mrb[0].mxu0
  %v577 = vadd.f32 0.0, %v576
  %v578 = vpop.f32.mrb[0].mxu0
  %579 = vmatprep.mubr.f32.mxu0 0.0
  %580 = vmatmul.mubr.f32.gmra.mrb[0].mxu0 %v431
  %v581 = vpop.f32.mrb[0].mxu0
  %v582 = vadd.f32 0.0, %v581
  %v583 = vpop.f32.mrb[0].mxu0
  %584 = vmatprep.mubr.f32.mxu0 0.0
  %585 = vmatmul.mubr.f32.gmra.mrb[0].mxu0 %v432
  %v586 = vpop.f32.mrb[0].mxu0
  %v587 = vadd.f32 0.0, %v586
  %v588 = vpop.f32.mrb[0].mxu0
  %589 = vmatprep.mubr.f32.mxu0 0.0
  %590 = vmatmul.mubr.f32.gmra.mrb[0].mxu0 %v433
  %v591 = vpop.f32.mrb[0].mxu0
  %v592 = vadd.f32 0.0, %v591
  %v593 = vpop.f32.mrb[0].mxu0
  %594 = vdwg.mxu0
  %v595 = vlaneseq
  %v596 = vshrl.u32 %v595, 7
  %v597 = vadd.s32 %v596, 8
  %v598 = vadd.s32 %v596, 16
  %v599 = vadd.s32 %v596, 24
  %v600 = vadd.s32 %v596, 32
  %v601 = vadd.s32 %v596, 40
  %v602 = vadd.s32 %v596, 48
  %v603 = vadd.s32 %v596, 56
  %v604 = vadd.s32 %v596, 64
  %v605 = vadd.s32 %v596, 72
  %v606 = vadd.s32 %v596, 80
  %v607 = vadd.s32 %v596, 88
  %v608 = vadd.s32 %v596, 96
  %v609 = vadd.s32 %v596, 104
  %v610 = vadd.s32 %v596, 112
  %v611 = vadd.s32 %v596, 120
  %vm612 = vcmp.lt.s32.totalorder %v596, 8
  %vm613 = vcmp.lt.s32.totalorder %v597, 8
  %vm614 = vcmp.lt.s32.totalorder %v598, 8
  %vm615 = vcmp.lt.s32.totalorder %v599, 8
  %vm616 = vcmp.lt.s32.totalorder %v600, 8
  %vm617 = vcmp.lt.s32.totalorder %v601, 8
  %vm618 = vcmp.lt.s32.totalorder %v602, 8
  %vm619 = vcmp.lt.s32.totalorder %v603, 8
  %vm620 = vcmp.lt.s32.totalorder %v604, 8
  %vm621 = vcmp.lt.s32.totalorder %v605, 8
  %vm622 = vcmp.lt.s32.totalorder %v606, 8
  %vm623 = vcmp.lt.s32.totalorder %v607, 8
  %vm624 = vcmp.lt.s32.totalorder %v608, 8
  %vm625 = vcmp.lt.s32.totalorder %v609, 8
  %vm626 = vcmp.lt.s32.totalorder %v610, 8
  %vm627 = vcmp.lt.s32.totalorder %v611, 8
  %v628 = vsel %vm612, %v517, -1e+30
  %v629 = vsel %vm613, %v522, -1e+30
  %v630 = vsel %vm614, %v527, -1e+30
  %v631 = vsel %vm615, %v532, -1e+30
  %v632 = vsel %vm616, %v537, -1e+30
  %v633 = vsel %vm617, %v542, -1e+30
  %v634 = vsel %vm618, %v547, -1e+30
  %v635 = vsel %vm619, %v552, -1e+30
  %v636 = vsel %vm620, %v557, -1e+30
  %v637 = vsel %vm621, %v562, -1e+30
  %v638 = vsel %vm622, %v567, -1e+30
  %v639 = vsel %vm623, %v572, -1e+30
  %v640 = vsel %vm624, %v577, -1e+30
  %v641 = vsel %vm625, %v582, -1e+30
  %v642 = vsel %vm626, %v587, -1e+30
  %v643 = vsel %vm627, %v592, -1e+30
  %vm644 = vcmask 7168
  %v645 = vsel %vm644, %v628, -inf
  %v646 = vsel %vm644, %v629, -inf
  %v647 = vsel %vm644, %v630, -inf
  %v648 = vsel %vm644, %v631, -inf
  %v649 = vsel %vm644, %v632, -inf
  %v650 = vmax.f32 %v645, %v649
  %v651 = vsel %vm644, %v633, -inf
  %v652 = vmax.f32 %v646, %v651
  %v653 = vsel %vm644, %v634, -inf
  %v654 = vmax.f32 %v647, %v653
  %v655 = vsel %vm644, %v635, -inf
  %v656 = vmax.f32 %v648, %v655
  %v657 = vsel %vm644, %v636, -inf
  %v658 = vmax.f32 %v650, %v657
  %v659 = vsel %vm644, %v637, -inf
  %v660 = vmax.f32 %v652, %v659
  %v661 = vsel %vm644, %v638, -inf
  %v662 = vmax.f32 %v654, %v661
  %v663 = vsel %vm644, %v639, -inf
  %v664 = vmax.f32 %v656, %v663
  %v665 = vsel %vm644, %v640, -inf
  %v666 = vmax.f32 %v658, %v665
  %v667 = vsel %vm644, %v641, -inf
  %v668 = vmax.f32 %v660, %v667
  %v669 = vsel %vm644, %v642, -inf
  %v670 = vmax.f32 %v662, %v669
  %v671 = vsel %vm644, %v643, -inf
  %v672 = vmax.f32 %v664, %v671
  %v673 = vmax.f32 %v666, %v668
  %v674 = vmax.f32 %v670, %v672
  %v675 = vmax.f32 %v673, %v674
  %v676 = vrot.slane %v675, 4
  %v677 = vmax.f32 %v675, %v676
  %v678 = vrot.slane %v677, 2
  %v679 = vmax.f32 %v677, %v678
  %v680 = vrot.slane %v679, 1
  %v681 = vmax.f32 %v679, %v680
  %v682 = vsub.f32 %v628, %v681
  %v683 = vsub.f32 %v629, %v681
  %v684 = vsub.f32 %v630, %v681
  %v685 = vsub.f32 %v631, %v681
  %v686 = vsub.f32 %v632, %v681
  %v687 = vsub.f32 %v633, %v681
  %v688 = vsub.f32 %v634, %v681
  %v689 = vsub.f32 %v635, %v681
  %v690 = vsub.f32 %v636, %v681
  %v691 = vsub.f32 %v637, %v681
  %v692 = vsub.f32 %v638, %v681
  %v693 = vsub.f32 %v639, %v681
  %v694 = vsub.f32 %v640, %v681
  %v695 = vsub.f32 %v641, %v681
  %v696 = vsub.f32 %v642, %v681
  %v697 = vsub.f32 %v643, %v681
  %v698 = vmul.f32 %v682, 1.442695
  %v699 = vpow.pop %v698
  %v700 = vmul.f32 %v683, 1.442695
  %v701 = vpow.pop %v700
  %v702 = vmul.f32 %v684, 1.442695
  %v703 = vpow.pop %v702
  %v704 = vmul.f32 %v685, 1.442695
  %v705 = vpow.pop %v704
  %v706 = vmul.f32 %v686, 1.442695
  %v707 = vpow.pop %v706
  %v708 = vmul.f32 %v687, 1.442695
  %v709 = vpow.pop %v708
  %v710 = vmul.f32 %v688, 1.442695
  %v711 = vpow.pop %v710
  %v712 = vmul.f32 %v689, 1.442695
  %v713 = vpow.pop %v712
  %v714 = vmul.f32 %v690, 1.442695
  %v715 = vpow.pop %v714
  %v716 = vmul.f32 %v691, 1.442695
  %v717 = vpow.pop %v716
  %v718 = vmul.f32 %v692, 1.442695
  %v719 = vpow.pop %v718
  %v720 = vmul.f32 %v693, 1.442695
  %v721 = vpow.pop %v720
  %v722 = vmul.f32 %v694, 1.442695
  %v723 = vpow.pop %v722
  %v724 = vmul.f32 %v695, 1.442695
  %v725 = vpow.pop %v724
  %v726 = vmul.f32 %v696, 1.442695
  %v727 = vpow.pop %v726
  %v728 = vmul.f32 %v697, 1.442695
  %v729 = vpow.pop %v728
  %v730 = vsel %vm644, %v699, 0.0
  %v731 = vsel %vm644, %v701, 0.0
  %v732 = vadd.f32 %v730, %v731
  %v733 = vsel %vm644, %v703, 0.0
  %v734 = vadd.f32 %v732, %v733
  %v735 = vsel %vm644, %v705, 0.0
  %v736 = vadd.f32 %v734, %v735
  %v737 = vsel %vm644, %v707, 0.0
  %v738 = vadd.f32 %v736, %v737
  %v739 = vsel %vm644, %v709, 0.0
  %v740 = vadd.f32 %v738, %v739
  %v741 = vsel %vm644, %v711, 0.0
  %v742 = vadd.f32 %v740, %v741
  %v743 = vsel %vm644, %v713, 0.0
  %v744 = vadd.f32 %v742, %v743
  %v745 = vsel %vm644, %v715, 0.0
  %v746 = vadd.f32 %v744, %v745
  %v747 = vsel %vm644, %v717, 0.0
  %v748 = vadd.f32 %v746, %v747
  %v749 = vsel %vm644, %v719, 0.0
  %v750 = vadd.f32 %v748, %v749
  %v751 = vsel %vm644, %v721, 0.0
  %v752 = vadd.f32 %v750, %v751
  %v753 = vsel %vm644, %v723, 0.0
  %v754 = vadd.f32 %v752, %v753
  %v755 = vsel %vm644, %v725, 0.0
  %v756 = vadd.f32 %v754, %v755
  %v757 = vsel %vm644, %v727, 0.0
  %v758 = vadd.f32 %v756, %v757
  %v759 = vsel %vm644, %v729, 0.0
  %v760 = vadd.f32 %v758, %v759
  %v761 = vrot.slane %v760, 4
  %v762 = vadd.f32 %v760, %v761
  %v763 = vrot.slane %v762, 2
  %v764 = vadd.f32 %v762, %v763
  %v765 = vrot.slane %v764, 1
  %v766 = vadd.f32 %v764, %v765
  %v767 = vrcp.pop %v766
  %v768 = vmul.f32 %v699, %v767
  %v769 = vmul.f32 %v701, %v767
  %v770 = vmul.f32 %v703, %v767
  %v771 = vmul.f32 %v705, %v767
  %v772 = vmul.f32 %v707, %v767
  %v773 = vmul.f32 %v709, %v767
  %v774 = vmul.f32 %v711, %v767
  %v775 = vmul.f32 %v713, %v767
  %v776 = vmul.f32 %v715, %v767
  %v777 = vmul.f32 %v717, %v767
  %v778 = vmul.f32 %v719, %v767
  %v779 = vmul.f32 %v721, %v767
  %v780 = vmul.f32 %v723, %v767
  %v781 = vmul.f32 %v725, %v767
  %v782 = vmul.f32 %v727, %v767
  %v783 = vmul.f32 %v729, %v767
  %784 = vst.msk [vmem:[%s6] sm:$0xff] %vm644, %v768
  %785 = vst.msk [vmem:[%s6 + $0x8] sm:$0xff] %vm644, %v769
  %786 = vst.msk [vmem:[%s6 + $0x10] sm:$0xff] %vm644, %v770
  %787 = vst.msk [vmem:[%s6 + $0x18] sm:$0xff] %vm644, %v771
  %788 = vst.msk [vmem:[%s6 + $0x20] sm:$0xff] %vm644, %v772
  %789 = vst.msk [vmem:[%s6 + $0x28] sm:$0xff] %vm644, %v773
  %790 = vst.msk [vmem:[%s6 + $0x30] sm:$0xff] %vm644, %v774
  %791 = vst.msk [vmem:[%s6 + $0x38] sm:$0xff] %vm644, %v775
  %792 = vst.msk [vmem:[%s6 + $0x40] sm:$0xff] %vm644, %v776
  %793 = vst.msk [vmem:[%s6 + $0x48] sm:$0xff] %vm644, %v777
  %794 = vst.msk [vmem:[%s6 + $0x50] sm:$0xff] %vm644, %v778
  %795 = vst.msk [vmem:[%s6 + $0x58] sm:$0xff] %vm644, %v779
  %796 = vst.msk [vmem:[%s6 + $0x60] sm:$0xff] %vm644, %v780
  %797 = vst.msk [vmem:[%s6 + $0x68] sm:$0xff] %vm644, %v781
  %798 = vst.msk [vmem:[%s6 + $0x70] sm:$0xff] %vm644, %v782
  %799 = vst.msk [vmem:[%s6 + $0x78] sm:$0xff] %vm644, %v783
  // Predicated region
  $region22: #{hgvae_forward.8} parent=0 // pred_check
    _
  $region23: #{hgvae_forward.8} parent=0 // pred_check_branch
    %801 = sbr.rel (0) target = $region25
  $region24: #{hgvae_forward.8} parent=0 // pred_region
    _
  $region25: #{hgvae_forward.8} parent=0 // pred_fallthru
    _
  // Predicated region
  $region26: #{hgvae_forward.8} parent=0 // pred_check
    _
  $region27: #{hgvae_forward.8} parent=0 // pred_check_branch
    %803 = sbr.rel (0) target = $region29
  $region28: #{hgvae_forward.8} parent=0 // pred_region
    _
  $region29: #{hgvae_forward.8} parent=0 // pred_fallthru
    _
  // Predicated region
  $region30: #{hgvae_forward.8} parent=0 // pred_check
    _
  $region31: #{hgvae_forward.8} parent=0 // pred_check_branch
    %805 = sbr.rel (0) target = $region33
  $region32: #{hgvae_forward.8} parent=0 // pred_region
    _
  $region33: #{hgvae_forward.8} parent=0 // pred_fallthru
    _
  // Predicated region
  $region34: #{hgvae_forward.8} parent=0 // pred_check
    _
  $region35: #{hgvae_forward.8} parent=0 // pred_check_branch
    %807 = sbr.rel (0) target = $region37
  $region36: #{hgvae_forward.8} parent=0 // pred_region
    _
  $region37: #{hgvae_forward.8} parent=0 // pred_fallthru
    _

// kernel: hgvae_forward.9
$region0: #{hgvae_forward.9}
  #allocation0 [shape = 'u32[]', space=smem, size = 0x4, offset = 0x4, fixed_abs, tag = 'smem constant byte address 0x4 - core index']
  #allocation1 [shape = 'u32[144,128]{1,0:T(1,128)}', space=vmem, size = 0x12000, scoped, tag = 'internal scratch']
  %s0 = inlined_call_operand.vmem [shape: f32[16,128], index: 0, kind: input, shape index: {}]
  %s1 = inlined_call_operand.vmem [shape: f32[128,128], index: 1, kind: input, shape index: {}]
  %s2 = inlined_call_operand.vmem [shape: f32[16,128], index: 2, kind: output, shape index: {}]
  %s3 = sld [smem:[#allocation0]]
  $region41: #{hgvae_forward.9} parent=0
    _
  %s5 = ssub.s32 1, %s3
  %s6 = scalar_select 0, %s5, %s3
  loop: start=0, step=1, limit=4
  $region2: #{hgvae_forward.9} parent=0 // loop_pre_header
    _
  $region3: #{hgvae_forward.9} parent=0 // loop_header
    %s8 = sphi 0, %s12
    %p9 = scmp.ge.s32.totalorder %s8, 4
    %s18 = sphi 0, %s20
    %s21 = sphi 0, %s18
    %s22 = sphi 0, %s21
    %s38 = sphi 0, %s22
    %s42 = sphi 0, %s42
    %s44 = sphi 0, %s42
    %s45 = sphi 0, %s44
    %s59 = sphi 0, %s45
    %s65 = sphi 0, %s67
    %s68 = sphi 0, %s65
    %s69 = sphi 0, %s68
    %s85 = sphi 0, %s69
  $region4: #{hgvae_forward.9} parent=0 // loop_header_branch
    %11 = sbr.rel (%p9) target = $region8
  $region5: #{hgvae_forward.9} parent=0 // loop_body
    %s13 = ssub.s32 %s8, 1
    %s14 = ssub.s32 %s8, 2
    %s15 = sadd.s32 %s8, 1
    %s16 = ssub.s32 %s8, %s15
    %p17 = scmp.eq.s32.totalorder %s16, 0
    %s19 = sadd.s32 %s18, 1
    %s20 = scalar_select %p17, %s18, %s19
    %p23 = pneg %p17
    %p24 = scmp.eq.s32.totalorder %s8, 1
    %p25 = por %p23, %p24
    %p26 = scmp.ne.s32.totalorder %s18, %s21
    %p27 = scmp.eq.s32.totalorder %s8, 0
    %p28 = por %p26, %p27
    %p29 = scmp.ne.s32.totalorder %s18, %s21
    %p30 = scmp.eq.s32.totalorder %s13, 1
    %p31 = por %p29, %p30
    %p32 = scmp.ne.s32.totalorder %s21, %s22
    %p33 = scmp.eq.s32.totalorder %s13, 0
    %p34 = por %p32, %p33
    %p35 = scmp.ne.s32.totalorder %s21, %s22
    %p36 = scmp.eq.s32.totalorder %s14, 1
    %p37 = por %p35, %p36
    %p39 = scmp.ne.s32.totalorder %s22, %s38
    %p40 = scmp.eq.s32.totalorder %s14, 0
    %p41 = por %p39, %p40
    %s43 = sadd.s32 %s42, 1
    %p46 = scmp.eq.s32.totalorder %s8, 1
    %p47 = scmp.ne.s32.totalorder %s42, %s44
    %p48 = scmp.eq.s32.totalorder %s8, 0
    %p49 = por %p47, %p48
    %p50 = scmp.ne.s32.totalorder %s42, %s44
    %p51 = scmp.eq.s32.totalorder %s13, 1
    %p52 = por %p50, %p51
    %p53 = scmp.ne.s32.totalorder %s44, %s45
    %p54 = scmp.eq.s32.totalorder %s13, 0
    %p55 = por %p53, %p54
    %p56 = scmp.ne.s32.totalorder %s44, %s45
    %p57 = scmp.eq.s32.totalorder %s14, 1
    %p58 = por %p56, %p57
    %p60 = scmp.ne.s32.totalorder %s45, %s59
    %p61 = scmp.eq.s32.totalorder %s14, 0
    %p62 = por %p60, %p61
    %s63 = ssub.s32 %s8, %s15
    %p64 = scmp.eq.s32.totalorder %s63, 0
    %s66 = sadd.s32 %s65, 1
    %s67 = scalar_select %p64, %s65, %s66
    %p70 = pneg %p64
    %p71 = scmp.eq.s32.totalorder %s8, 1
    %p72 = por %p70, %p71
    %p73 = scmp.ne.s32.totalorder %s65, %s68
    %p74 = scmp.eq.s32.totalorder %s8, 0
    %p75 = por %p73, %p74
    %p76 = scmp.ne.s32.totalorder %s65, %s68
    %p77 = scmp.eq.s32.totalorder %s13, 1
    %p78 = por %p76, %p77
    %p79 = scmp.ne.s32.totalorder %s68, %s69
    %p80 = scmp.eq.s32.totalorder %s13, 0
    %p81 = por %p79, %p80
    %p82 = scmp.ne.s32.totalorder %s68, %s69
    %p83 = scmp.eq.s32.totalorder %s14, 1
    %p84 = por %p82, %p83
    %p86 = scmp.ne.s32.totalorder %s69, %s85
    %p87 = scmp.eq.s32.totalorder %s14, 0
    %p88 = por %p86, %p87
    %p89 = scmp.le.s32.totalorder 1, %s8
    %p90 = scmp.lt.s32.totalorder %s8, 3
    %p91 = pnand %p89, %p90
    %p92 = pneg %p91
    // Predicated region
    $region9: #{hgvae_forward.9} parent=5 // pred_check
      _
    $region10: #{hgvae_forward.9} parent=5 // pred_check_branch
      %94 = sbr.rel (%p91) target = $region12
    $region11: #{hgvae_forward.9} parent=5 // pred_region
      %s95 = ssub.s32 %s8, 1
      // Predicated region
      $region13: #{hgvae_forward.9} parent=11 // pred_check
        %p96 = pneg %p55
      $region14: #{hgvae_forward.9} parent=11 // pred_check_branch
        %98 = sbr.rel (%p96) target = $region16
      $region15: #{hgvae_forward.9} parent=11 // pred_region
        _
      $region16: #{hgvae_forward.9} parent=11 // pred_fallthru
        _
    $region12: #{hgvae_forward.9} parent=5 // pred_fallthru
      _
    %p99 = scmp.lt.s32.totalorder %s8, 2
    // Predicated region
    $region17: #{hgvae_forward.9} parent=5 // pred_check
      %p100 = pneg %p99
    $region18: #{hgvae_forward.9} parent=5 // pred_check_branch
      %102 = sbr.rel (%p100) target = $region20
    $region19: #{hgvae_forward.9} parent=5 // pred_region
      // Predicated region
      $region21: #{hgvae_forward.9} parent=19 // pred_check
        %p103 = pneg %p28
      $region22: #{hgvae_forward.9} parent=19 // pred_check_branch
        %105 = sbr.rel (%p103) target = $region24
      $region23: #{hgvae_forward.9} parent=19 // pred_region
        %p106 = scmp.lt.s32.totalorder %s8, 1
        %s107 = scalar_select %p106, %s8, 1
        %s108 = smul.addr %s107, 8
        %s109 = scalar_lea.vmem %s0, %s108
      $region24: #{hgvae_forward.9} parent=19 // pred_fallthru
        _
    $region20: #{hgvae_forward.9} parent=5 // pred_fallthru
      _
    %p110 = scmp.le.s32.totalorder 1, %s8
    %p111 = scmp.lt.s32.totalorder %s8, 3
    %p112 = pnand %p110, %p111
    %p113 = pneg %p112
    // Predicated region
    $region25: #{hgvae_forward.9} parent=5 // pred_check
      _
    $region26: #{hgvae_forward.9} parent=5 // pred_check_branch
      %115 = sbr.rel (%p112) target = $region28
    $region27: #{hgvae_forward.9} parent=5 // pred_region
      %s116 = ssub.s32 %s8, 1
      %p117 = scmp.lt.s32.totalorder %s13, 1
      %s118 = scalar_select %p117, %s13, 1
      %s119 = smul.addr %s118, 8
      %s120 = scalar_lea.vmem %s0, %s119
      %p121 = pneg %p34
      %p122 = pneg %p31
      %p123 = pneg %p55
      %p124 = pneg %p52
      %p125 = pneg %p81
      %p126 = pneg %p78
      %p127 = scmp.lt.s32.totalorder %s13, 1
      %s128 = scalar_select %p127, %s13, 1
      %s129 = smul.addr %s128, 8
      %s130 = scalar_lea.vmem %s2, %s129
      %p131 = scmp.lt.s32.totalorder %s13, 1
      %s132 = scalar_select %p131, %s13, 1
      %s133 = smul.addr %s132, 8
      %s134 = scalar_lea.vmem %s0, %s133
      %p135 = scmp.lt.s32.totalorder %s13, 1
      %s136 = scalar_select %p135, %s13, 1
      %s137 = smul.addr %s136, 8
      %s138 = scalar_lea.vmem %s2, %s137
      %v139 = vld [vmem:[%s134] sm:$0xff]
      %v140 = vld [vmem:[%s1] sm:$0xff]
      %v141 = vld [vmem:[%s1 + $0x8] sm:$0xff]
      %v142 = vld [vmem:[%s1 + $0x10] sm:$0xff]
      %v143 = vld [vmem:[%s1 + $0x18] sm:$0xff]
      %v144 = vld [vmem:[%s1 + $0x20] sm:$0xff]
      %v145 = vld [vmem:[%s1 + $0x28] sm:$0xff]
      %v146 = vld [vmem:[%s1 + $0x30] sm:$0xff]
      %v147 = vld [vmem:[%s1 + $0x38] sm:$0xff]
      %v148 = vld [vmem:[%s1 + $0x40] sm:$0xff]
      %v149 = vld [vmem:[%s1 + $0x48] sm:$0xff]
      %v150 = vld [vmem:[%s1 + $0x50] sm:$0xff]
      %v151 = vld [vmem:[%s1 + $0x58] sm:$0xff]
      %v152 = vld [vmem:[%s1 + $0x60] sm:$0xff]
      %v153 = vld [vmem:[%s1 + $0x68] sm:$0xff]
      %v154 = vld [vmem:[%s1 + $0x70] sm:$0xff]
      %v155 = vld [vmem:[%s1 + $0x78] sm:$0xff]
      %156 = vmatprep.subr.mxu0 0.0
      %157 = vmatpush1.xpose.msra.mxu0 %v140
      %158 = vmatprep.subr.mxu0 0.0
      %159 = vmatpush1.xpose.msra.mxu0 %v141
      %160 = vmatprep.subr.mxu0 0.0
      %161 = vmatpush1.xpose.msra.mxu0 %v142
      %162 = vmatprep.subr.mxu0 0.0
      %163 = vmatpush1.xpose.msra.mxu0 %v143
      %164 = vmatprep.subr.mxu0 0.0
      %165 = vmatpush1.xpose.msra.mxu0 %v144
      %166 = vmatprep.subr.mxu0 0.0
      %167 = vmatpush1.xpose.msra.mxu0 %v145
      %168 = vmatprep.subr.mxu0 0.0
      %169 = vmatpush1.xpose.msra.mxu0 %v146
      %170 = vmatprep.subr.mxu0 0.0
      %171 = vmatpush1.xpose.msra.mxu0 %v147
      %172 = vmatprep.subr.mxu0 0.0
      %173 = vmatpush1.xpose.msra.mxu0 %v148
      %174 = vmatprep.subr.mxu0 0.0
      %175 = vmatpush1.xpose.msra.mxu0 %v149
      %176 = vmatprep.subr.mxu0 0.0
      %177 = vmatpush1.xpose.msra.mxu0 %v150
      %178 = vmatprep.subr.mxu0 0.0
      %179 = vmatpush1.xpose.msra.mxu0 %v151
      %180 = vmatprep.subr.mxu0 0.0
      %181 = vmatpush1.xpose.msra.mxu0 %v152
      %182 = vmatprep.subr.mxu0 0.0
      %183 = vmatpush1.xpose.msra.mxu0 %v153
      %184 = vmatprep.subr.mxu0 0.0
      %185 = vmatpush1.xpose.msra.mxu0 %v154
      %186 = vmatprep.subr.mxu0 0.0
      %187 = vmatpush1.xpose.msra.mxu0 %v155
      %188 = vmatprep.subr.mxu0 0.0
      %189 = vmatpush1.xpose.msra.mxu0 0.0
      %190 = vmatprep.subr.mxu0 0.0
      %191 = vmatpush1.xpose.msra.mxu0 0.0
      %192 = vmatprep.subr.mxu0 0.0
      %193 = vmatpush1.xpose.msra.mxu0 0.0
      %194 = vmatprep.subr.mxu0 0.0
      %195 = vmatpush1.xpose.msra.mxu0 0.0
      %196 = vmatprep.subr.mxu0 0.0
      %197 = vmatpush1.xpose.msra.mxu0 0.0
      %198 = vmatprep.subr.mxu0 0.0
      %199 = vmatpush1.xpose.msra.mxu0 0.0
      %200 = vmatprep.subr.mxu0 0.0
      %201 = vmatpush1.xpose.msra.mxu0 0.0
      %202 = vmatprep.subr.mxu0 0.0
      %203 = vmatpush1.xpose.msra.mxu0 0.0
      %204 = vmatprep.subr.mxu0 0.0
      %205 = vmatpush1.xpose.msra.mxu0 0.0
      %206 = vmatprep.subr.mxu0 0.0
      %207 = vmatpush1.xpose.msra.mxu0 0.0
      %208 = vmatprep.subr.mxu0 0.0
      %209 = vmatpush1.xpose.msra.mxu0 0.0
      %210 = vmatprep.subr.mxu0 0.0
      %211 = vmatpush1.xpose.msra.mxu0 0.0
      %212 = vmatprep.subr.mxu0 0.0
      %213 = vmatpush1.xpose.msra.mxu0 0.0
      %214 = vmatprep.subr.mxu0 0.0
      %215 = vmatpush1.xpose.msra.mxu0 0.0
      %216 = vmatprep.subr.mxu0 0.0
      %217 = vmatpush1.xpose.msra.mxu0 0.0
      %218 = vmatprep.subr.mxu0 0.0
      %219 = vmatpush1.xpose.msra.mxu0 0.0
      %220 = vmatprep.mubr.f32.mxu0 0.0
      %221 = vmatmul.mubr.f32.gmra.mrb[0].mxu0 %v139
      %v222 = vpop.f32.mrb[0].mxu0
      %v223 = vadd.f32 0.0, %v222
      %v224 = vpop.f32.mrb[0].mxu0
      %225 = vdwg.mxu0
      %v226 = vxor.u32 %v223, 2147483648
      %v227 = vmul.f32 %v226, 1.442695
      %v228 = vpow.pop %v227
      %v229 = vadd.f32 %v228, 1.0
      %v230 = vrcp.pop %v229
      %v231 = vmul.f32 1.0, %v230
      %232 = vst [vmem:[%s138] sm:$0xff] %v231
      %p233 = scmp.lt.s32.totalorder %s13, 1
      %s234 = scalar_select %p233, %s13, 1
      %s235 = smul.addr %s234, 8
      %s236 = scalar_lea.vmem %s2, %s235
      // Predicated region
      $region29: #{hgvae_forward.9} parent=27 // pred_check
        %p237 = pneg %p78
      $region30: #{hgvae_forward.9} parent=27 // pred_check_branch
        %239 = sbr.rel (%p237) target = $region32
      $region31: #{hgvae_forward.9} parent=27 // pred_region
        _
      $region32: #{hgvae_forward.9} parent=27 // pred_fallthru
        _
    $region28: #{hgvae_forward.9} parent=5 // pred_fallthru
      _
    %p240 = scmp.le.s32.totalorder 2, %s8
    // Predicated region
    $region33: #{hgvae_forward.9} parent=5 // pred_check
      %p241 = pneg %p240
    $region34: #{hgvae_forward.9} parent=5 // pred_check_branch
      %243 = sbr.rel (%p241) target = $region36
    $region35: #{hgvae_forward.9} parent=5 // pred_region
      %s244 = ssub.s32 %s8, 2
      // Predicated region
      $region37: #{hgvae_forward.9} parent=35 // pred_check
        %p245 = pneg %p84
      $region38: #{hgvae_forward.9} parent=35 // pred_check_branch
        %247 = sbr.rel (%p245) target = $region40
      $region39: #{hgvae_forward.9} parent=35 // pred_region
        %p248 = scmp.lt.s32.totalorder %s14, 1
        %s249 = scalar_select %p248, %s14, 1
        %s250 = smul.addr %s249, 8
        %s251 = scalar_lea.vmem %s2, %s250
      $region40: #{hgvae_forward.9} parent=35 // pred_fallthru
        _
    $region36: #{hgvae_forward.9} parent=5 // pred_fallthru
      _
  $region6: #{hgvae_forward.9} parent=0 // loop_footer
    %s12 = sadd.s32 1, %s8
  $region7: #{hgvae_forward.9} parent=0 // loop_footer_branch
    %7 = sbr.rel target = $region3
  $region8: #{hgvae_forward.9} parent=0 // loop_exit
    _

</llo_original>
